<compile_context>
chip_gen: v6e
topology: v6e:2x2x1
jax: 0.10.0
libtpu: 0.0.40
codegen_flags: <defaults>
</compile_context>

<pallas_src>
import functools

import jax
import jax.numpy as jnp
from jax.experimental import pallas as pl
from jax.experimental.pallas import tpu as pltpu


def _round_up(x, m):
    return ((x + m - 1) // m) * m


def _vmem_limit_bytes():
    """Generation-aware scoped-VMEM budget (~3/4 of physical, capped)."""
    try:
        cap = int(pltpu.get_tpu_info().vmem_capacity_bytes)
        return max(32 * 1024 * 1024, min((cap * 3) // 4, 96 * 1024 * 1024))
    except Exception:
        # Conservative: fits v7x's 64 MiB/TC and is plenty on v5e/v6e.
        return 48 * 1024 * 1024


def _sigmoid(z, approx):
    if approx:
        # exp + approx reciprocal both run on the EUP slot (VPU/MXU stay free).
        return pl.reciprocal(1.0 + jnp.exp(-z), approx=True)
    return 1.0 / (1.0 + jnp.exp(-z))


# ---------------------------------------------------------------------------
# Fully-fused small-graph kernel: everything VMEM-resident, one launch.
# ---------------------------------------------------------------------------
def _fused_small_kernel(a_ref, x_ref, gamma_ref, beta_ref, b2_ref, out_ref, *,
                        n_real, approx):
    a = a_ref[...]
    h = jnp.dot(a, x_ref[...], preferred_element_type=jnp.float32)
    inv_n = 1.0 / n_real                      # padded rows of H are exactly 0
    mean = jnp.sum(h, axis=0, keepdims=True) * inv_n
    var = jnp.maximum(jnp.sum(h * h, axis=0, keepdims=True) * inv_n
                      - mean * mean, 0.0)
    inv_std = jax.lax.rsqrt(var + 1e-5)
    scale = gamma_ref[...] * inv_std
    shift = beta_ref[...] - mean * scale
    hs = _sigmoid(h * scale + shift, approx).astype(a.dtype)
    # Padded node columns of A are zero, so padded rows of hs contribute nothing.
    out_ref[...] = jnp.dot(a, hs, preferred_element_type=jnp.float32) + b2_ref[...]


# ---------------------------------------------------------------------------
# Tiled pass 1: H = A_hat @ X  (+ per-row-tile partial BN statistics)
# ---------------------------------------------------------------------------
def _pass1_kernel(a_ref, x_ref, h_ref, psum_ref, psq_ref, *, tile_n):
    k = pl.program_id(1)

    @pl.when(k == 0)
    def _():
        h_ref[...] = jnp.zeros_like(h_ref)

    start = pl.multiple_of(k * tile_n, tile_n)
    x_blk = x_ref[pl.ds(start, tile_n), :]        # X is VMEM-resident
    h_ref[...] += jnp.dot(a_ref[...], x_blk, preferred_element_type=jnp.float32)

    @pl.when(k == pl.num_programs(1) - 1)
    def _():
        h = h_ref[...]
        psum_ref[0] = jnp.sum(h, axis=0, keepdims=True)
        psq_ref[0] = jnp.sum(h * h, axis=0, keepdims=True)


# ---------------------------------------------------------------------------
# Tiled pass 2 (fused BN + sigmoid): out = A_hat @ sigmoid(BN(H)) + b2
# ---------------------------------------------------------------------------
def _pass2_kernel(a_ref, h_ref, scale_ref, shift_ref, b2_ref, out_ref, *,
                  tile_n, approx):
    k = pl.program_id(1)

    @pl.when(k == 0)
    def _():
        out_ref[...] = jnp.zeros_like(out_ref)

    start = pl.multiple_of(k * tile_n, tile_n)
    h_blk = h_ref[pl.ds(start, tile_n), :]        # H is VMEM-resident (f32)
    hs_blk = _sigmoid(h_blk * scale_ref[...] + shift_ref[...],
                      approx).astype(a_ref.dtype)
    out_ref[...] += jnp.dot(a_ref[...], hs_blk, preferred_element_type=jnp.float32)

    @pl.when(k == pl.num_programs(1) - 1)
    def _():
        out_ref[...] = out_ref[...] + b2_ref[...]


def prepare_adjacency(adj_hat, *, tile_n=256, compute_dtype=jnp.bfloat16):
    """Pad + cast A_hat once; reuse the result across forward calls.

    The two matmul passes are A-bandwidth-bound, so re-casting f32->bf16 per
    call would add ~2.5x the dominant HBM traffic.
    """
    tile_n = _round_up(max(int(tile_n), 128), 128)
    n = adj_hat.shape[0]
    n_pad = _round_up(n, tile_n)
    return jnp.pad(adj_hat, ((0, n_pad - n), (0, n_pad - n))).astype(compute_dtype)


def subgcn_forward(adj_hat, feature, b1, b2, gamma, beta, *,
                   tile_n=256, compute_dtype=jnp.bfloat16,
                   adj_prepared=None, force_tiled=False):
    """SUBGCN forward. adj_hat: (N, N) normalized adjacency; feature: (N, D).

    If `adj_prepared` (output of prepare_adjacency) is given, the per-call
    pad/cast of A is skipped and its dtype defines the compute dtype.
    b1 (gcn1 bias) is accepted for signature parity but folded out analytically.
    """
    del b1
    n, d = feature.shape
    dp = _round_up(d, 128)                    # lane-dense feature dim
    f32 = jnp.float32
    tile_n = _round_up(max(int(tile_n), 128), 128)

    if adj_prepared is not None:
        adj_p = adj_prepared
        n_pad = adj_p.shape[0]
        compute_dtype = adj_p.dtype
    else:
        n_pad = _round_up(n, tile_n)
        adj_p = jnp.pad(adj_hat, ((0, n_pad - n), (0, n_pad - n))).astype(compute_dtype)

    x_p = jnp.pad(feature, ((0, n_pad - n), (0, dp - d))).astype(compute_dtype)
    b2_p = jnp.pad(b2.astype(f32), ((0, 0), (0, dp - d)))
    gamma_p = jnp.pad(gamma.astype(f32), ((0, 0), (0, dp - d)))
    beta_p = jnp.pad(beta.astype(f32), ((0, 0), (0, dp - d)))

    approx = jnp.dtype(compute_dtype) == jnp.dtype(jnp.bfloat16)
    vmem_limit = _vmem_limit_bytes()
    item = jnp.dtype(compute_dtype).itemsize

    a_bytes = n_pad * n_pad * item
    feat_bytes = n_pad * dp * item
    h_bytes = n_pad * dp * 4

    # ---- small-graph fast path: one fully-fused VMEM-resident kernel --------
    fused_bytes = a_bytes + feat_bytes + 5 * h_bytes   # A + X + f32 temps + out
    if not force_tiled and fused_bytes <= min(vmem_limit // 2, 24 * 1024 * 1024):
        out_p = pl.pallas_call(
            functools.partial(_fused_small_kernel, n_real=n, approx=approx),
            out_shape=jax.ShapeDtypeStruct((n_pad, dp), f32),
            in_specs=[pl.BlockSpec(memory_space=pltpu.MemorySpace.VMEM)] * 5,
            out_specs=pl.BlockSpec(memory_space=pltpu.MemorySpace.VMEM),
            compiler_params=pltpu.CompilerParams(vmem_limit_bytes=vmem_limit),
            cost_estimate=pl.CostEstimate(
                flops=4 * n_pad * n_pad * dp,
                transcendentals=n_pad * dp,
                bytes_accessed=a_bytes + feat_bytes + h_bytes),
        )(adj_p, x_p, gamma_p, beta_p, b2_p)
        return out_p[:n, :d]

    # ---- tiled streaming path ------------------------------------------------
    # Keep the tile lane-aligned, dividing n_pad, and (if possible) >= 2 row
    # tiles so the "parallel" axis balances across two TensorCores (v7x).
    while tile_n > 128 and (n_pad % tile_n != 0 or n_pad // tile_n < 2):
        tile_n -= 128
    assert n_pad % tile_n == 0
    n_blk = n_pad // tile_n

    mm_params = pltpu.CompilerParams(
        dimension_semantics=("parallel", "arbitrary"),
        vmem_limit_bytes=vmem_limit)
    a_spec = pl.BlockSpec((tile_n, tile_n), lambda i, k: (i, k))
    row_spec = pl.BlockSpec((tile_n, dp), lambda i, k: (i, 0))
    stat_spec = pl.BlockSpec((1, 1, dp), lambda i, k: (i, 0, 0))

    def resident(shape, single_buffer):
        # Constant-index blocks are DMA'd once; single-buffering halves their
        # VMEM footprint (important on v7x's 64 MiB/TC).
        kwargs = {"pipeline_mode": pl.Buffered(1)} if single_buffer else {}
        return pl.BlockSpec(shape, lambda i, k: (0,) * len(shape), **kwargs)

    def run_tiled(single_buffer):
        # pass 1: H = A @ X, plus per-row-tile partial BN statistics
        h, psum, psq = pl.pallas_call(
            functools.partial(_pass1_kernel, tile_n=tile_n),
            grid=(n_blk, n_blk),
            in_specs=[a_spec, resident((n_pad, dp), single_buffer)],
            out_specs=(row_spec, stat_spec, stat_spec),
            out_shape=(
                jax.ShapeDtypeStruct((n_pad, dp), f32),
                jax.ShapeDtypeStruct((n_blk, 1, dp), f32),
                jax.ShapeDtypeStruct((n_blk, 1, dp), f32),
            ),
            compiler_params=mm_params,
            cost_estimate=pl.CostEstimate(
                flops=2 * n_pad * n_pad * dp, transcendentals=0,
                bytes_accessed=a_bytes + feat_bytes + h_bytes),
        )(adj_p, x_p)

        # merge per-tile stats (tiny, XLA) -> BN scale/shift in f32
        total = jnp.sum(psum[:, 0, :], axis=0)
        total_sq = jnp.sum(psq[:, 0, :], axis=0)
        mean = total / n                                    # real-N node stats
        var = jnp.maximum(total_sq / n - mean * mean, 0.0)  # biased (training)
        inv_std = jax.lax.rsqrt(var + 1e-5)
        scale = (gamma_p[0] * inv_std)[None, :]
        shift = (beta_p[0] - mean * gamma_p[0] * inv_std)[None, :]

        # pass 2 (fused BN + sigmoid): out = A @ sigmoid(BN(H)) + b2
        return pl.pallas_call(
            functools.partial(_pass2_kernel, tile_n=tile_n, approx=approx),
            grid=(n_blk, n_blk),
            in_specs=[a_spec,
                      resident((n_pad, dp), single_buffer),
                      resident((1, dp), single_buffer),
                      resident((1, dp), single_buffer),
                      resident((1, dp), single_buffer)],
            out_specs=row_spec,
            out_shape=jax.ShapeDtypeStruct((n_pad, dp), f32),
            compiler_params=mm_params,
            cost_estimate=pl.CostEstimate(
                flops=2 * n_pad * n_pad * dp + 4 * n_pad * dp * n_blk,
                transcendentals=n_pad * dp * n_blk,
                bytes_accessed=a_bytes + h_bytes + h_bytes),
        )(adj_p, h, scale, shift, b2_p)

    try:
        out_p = run_tiled(single_buffer=True)
    except Exception:
        # Fallback if this JAX build rejects Buffered(1) on pallas_call specs.
        out_p = run_tiled(single_buffer=False)

    return out_p[:n, :d]


def normalize_adj(adj):
    """D^{-1/2} A D^{-1/2}, as DGL GraphConv(norm='both') for a symmetric A."""
    deg = jnp.sum(adj, axis=1)
    d_inv_sqrt = jax.lax.rsqrt(jnp.maximum(deg, 1e-12))
    return adj * d_inv_sqrt[:, None] * d_inv_sqrt[None, :]


def reference_forward(adj_hat, feature, b1, b2, gamma, beta):
    h = adj_hat @ feature + b1
    mean = jnp.mean(h, axis=0, keepdims=True)
    var = jnp.mean((h - mean) ** 2, axis=0, keepdims=True)
    h = (h - mean) / jnp.sqrt(var + 1e-5) * gamma + beta
    h = 1.0 / (1.0 + jnp.exp(-h))
    return adj_hat @ h + b2


if __name__ == "__main__":
    key = jax.random.PRNGKey(0)
    k_adj, k_x, k_b1, k_b2, k_g, k_b = jax.random.split(key, 6)

    N = 384        # nodes (= batch * n_node * (depth - 1) in the parent model)
    IN_DIM = 48    # num_aspects * h1

    # Symmetric binary adjacency with self-loops (every node has degree > 0).
    a = (jax.random.uniform(k_adj, (N, N)) > 0.9).astype(jnp.float32)
    a = jnp.maximum(a, a.T)
    a = jnp.maximum(a, jnp.eye(N, dtype=jnp.float32))
    adj_hat = normalize_adj(a)

    feature = jax.random.normal(k_x, (N, IN_DIM), dtype=jnp.float32)
    b1 = 0.1 * jax.random.normal(k_b1, (1, IN_DIM), dtype=jnp.float32)
    b2 = 0.1 * jax.random.normal(k_b2, (1, IN_DIM), dtype=jnp.float32)
    gamma = 1.0 + 0.1 * jax.random.normal(k_g, (1, IN_DIM), dtype=jnp.float32)
    beta = 0.1 * jax.random.normal(k_b, (1, IN_DIM), dtype=jnp.float32)

    ref = reference_forward(adj_hat, feature, b1, b2, gamma, beta)

    # 1) fused single-kernel path, f32 (reference precision).
    out = jax.block_until_ready(
        subgcn_forward(adj_hat, feature, b1, b2, gamma, beta,
                       compute_dtype=jnp.float32))
    assert out.shape == (N, IN_DIM)
    assert jnp.allclose(out, ref, atol=1e-2, rtol=1e-2), "fused f32 mismatch"

    # 2) fused single-kernel path, bf16, with the A cast/pad hoisted out
    #    (steady-state reuse of A_hat across forward calls).
    adj_bf16 = prepare_adjacency(adj_hat, tile_n=256, compute_dtype=jnp.bfloat16)
    out = jax.block_until_ready(
        subgcn_forward(adj_hat, feature, b1, b2, gamma, beta,
                       adj_prepared=adj_bf16))
    assert out.shape == (N, IN_DIM)
    assert jnp.allclose(out, ref, atol=5e-2, rtol=5e-2), "fused bf16 mismatch"

    # 3) tiled streaming path (what large graphs take), f32.
    out = jax.block_until_ready(
        subgcn_forward(adj_hat, feature, b1, b2, gamma, beta,
                       compute_dtype=jnp.float32, tile_n=256, force_tiled=True))
    assert out.shape == (N, IN_DIM)
    assert jnp.allclose(out, ref, atol=1e-2, rtol=1e-2), "tiled f32 mismatch"

    # 4) tiled streaming path, bf16, with hoisted A preparation.
    out = jax.block_until_ready(
        subgcn_forward(adj_hat, feature, b1, b2, gamma, beta,
                       adj_prepared=adj_bf16, tile_n=256, force_tiled=True))
    assert out.shape == (N, IN_DIM)
    assert jnp.allclose(out, ref, atol=5e-2, rtol=5e-2), "tiled bf16 mismatch"

    print("KERNEL_OK")
</pallas_src>

<mosaic_0001>
module attributes {stable_mosaic.version = 11 : i64} {
  func.func @_fused_small_kernel(%arg0: memref<512x512xf32, #tpu.memory_space<vmem>>, %arg1: memref<512x128xf32, #tpu.memory_space<vmem>>, %arg2: memref<1x128xf32, #tpu.memory_space<vmem>>, %arg3: memref<1x128xf32, #tpu.memory_space<vmem>>, %arg4: memref<1x128xf32, #tpu.memory_space<vmem>>, %arg5: memref<512x128xf32, #tpu.memory_space<vmem>>) attributes {dimension_semantics = [], scalar_prefetch = 0 : i64, scratch_operands = 0 : i64, tpu.core_type = #tpu.core_type<tc>} {
    %c0 = arith.constant 0 : index
    %c0_0 = arith.constant 0 : index
    %0 = vector.load %arg0[%c0, %c0_0] : memref<512x512xf32, #tpu.memory_space<vmem>>, vector<512x512xf32>
    %c0_1 = arith.constant 0 : index
    %c0_2 = arith.constant 0 : index
    %1 = vector.load %arg1[%c0_1, %c0_2] : memref<512x128xf32, #tpu.memory_space<vmem>>, vector<512x128xf32>
    %cst = arith.constant dense<0.000000e+00> : vector<512x128xf32>
    %2 = tpu.matmul %0, %1, %cst {dimension_numbers = #tpu.dot_dimension_numbers<[1], [0], [0], [1], [0, 0, 1, 1], [], []>} : vector<512x512xf32>, vector<512x128xf32>, vector<512x128xf32> -> vector<512x128xf32>
    %cst_3 = arith.constant dense<0.000000e+00> : vector<128xf32>
    %3 = vector.multi_reduction <add>, %2, %cst_3 [0] : vector<512x128xf32> to vector<128xf32>
    %4 = vector.shape_cast %3 : vector<128xf32> to vector<1x128xf32>
    %cst_4 = arith.constant 0.00260416674 : f32
    %5 = vector.broadcast %cst_4 : f32 to vector<1x128xf32>
    %6 = arith.mulf %4, %5 : vector<1x128xf32>
    %7 = arith.mulf %2, %2 : vector<512x128xf32>
    %cst_5 = arith.constant dense<0.000000e+00> : vector<128xf32>
    %8 = vector.multi_reduction <add>, %7, %cst_5 [0] : vector<512x128xf32> to vector<128xf32>
    %9 = vector.shape_cast %8 : vector<128xf32> to vector<1x128xf32>
    %cst_6 = arith.constant 0.00260416674 : f32
    %10 = vector.broadcast %cst_6 : f32 to vector<1x128xf32>
    %11 = arith.mulf %9, %10 : vector<1x128xf32>
    %12 = arith.mulf %6, %6 : vector<1x128xf32>
    %13 = arith.subf %11, %12 : vector<1x128xf32>
    %cst_7 = arith.constant 0.000000e+00 : f32
    %14 = vector.broadcast %cst_7 : f32 to vector<1x128xf32>
    %15 = arith.maximumf %13, %14 : vector<1x128xf32>
    %cst_8 = arith.constant 9.99999974E-6 : f32
    %16 = vector.broadcast %cst_8 : f32 to vector<1x128xf32>
    %17 = arith.addf %15, %16 : vector<1x128xf32>
    %18 = math.rsqrt %17 : vector<1x128xf32>
    %c0_9 = arith.constant 0 : index
    %c0_10 = arith.constant 0 : index
    %19 = vector.load %arg2[%c0_9, %c0_10] : memref<1x128xf32, #tpu.memory_space<vmem>>, vector<1x128xf32>
    %20 = arith.mulf %19, %18 : vector<1x128xf32>
    %c0_11 = arith.constant 0 : index
    %c0_12 = arith.constant 0 : index
    %21 = vector.load %arg3[%c0_11, %c0_12] : memref<1x128xf32, #tpu.memory_space<vmem>>, vector<1x128xf32>
    %22 = arith.mulf %6, %20 : vector<1x128xf32>
    %23 = arith.subf %21, %22 : vector<1x128xf32>
    %24 = vector.broadcast %20 : vector<1x128xf32> to vector<512x128xf32>
    %25 = arith.mulf %2, %24 : vector<512x128xf32>
    %26 = vector.broadcast %23 : vector<1x128xf32> to vector<512x128xf32>
    %27 = arith.addf %25, %26 : vector<512x128xf32>
    %cst_13 = arith.constant 0.000000e+00 : f32
    %28 = vector.broadcast %cst_13 : f32 to vector<512x128xf32>
    %29 = arith.subf %28, %27 : vector<512x128xf32>
    %30 = math.exp %29 : vector<512x128xf32>
    %cst_14 = arith.constant 1.000000e+00 : f32
    %31 = vector.broadcast %cst_14 : f32 to vector<512x128xf32>
    %32 = arith.addf %31, %30 : vector<512x128xf32>
    %cst_15 = arith.constant 1.000000e+00 : f32
    %33 = vector.broadcast %cst_15 : f32 to vector<512x128xf32>
    %34 = arith.divf %33, %32 : vector<512x128xf32>
    %cst_16 = arith.constant dense<0.000000e+00> : vector<512x128xf32>
    %35 = tpu.matmul %0, %34, %cst_16 {dimension_numbers = #tpu.dot_dimension_numbers<[1], [0], [0], [1], [0, 0, 1, 1], [], []>} : vector<512x512xf32>, vector<512x128xf32>, vector<512x128xf32> -> vector<512x128xf32>
    %c0_17 = arith.constant 0 : index
    %c0_18 = arith.constant 0 : index
    %36 = vector.load %arg4[%c0_17, %c0_18] : memref<1x128xf32, #tpu.memory_space<vmem>>, vector<1x128xf32>
    %37 = vector.broadcast %36 : vector<1x128xf32> to vector<512x128xf32>
    %38 = arith.addf %35, %37 : vector<512x128xf32>
    %c0_19 = arith.constant 0 : index
    %c0_20 = arith.constant 0 : index
    %39 = vector.load %arg5[%c0_19, %c0_20] : memref<512x128xf32, #tpu.memory_space<vmem>>, vector<512x128xf32>
    tpu.vector_store %arg5[%c0_19, %c0_20], %38 {strides = array<i32>} : memref<512x128xf32, #tpu.memory_space<vmem>>, vector<512x128xf32>,
    return
  }
}

</mosaic_0001>

<llo_original>
// kernel: tpu_custom_call.1
$region0: #{tpu_custom_call.1}
  #allocation0 [shape = 'u32[]', space=smem, size = 0x4, offset = 0x4, fixed_abs, tag = 'smem constant byte address 0x4 - core index']
  #allocation1 [shape = 'u32[144,128]{1,0:T(1,128)}', space=vmem, size = 0x12000, scoped, tag = 'internal scratch']
  %s0 = inlined_call_operand.hbm [shape: f32[512,512], index: 0, kind: input, shape index: {}]
  %s1 = inlined_call_operand.hbm [shape: f32[512,128], index: 1, kind: input, shape index: {}]
  %s2 = inlined_call_operand.vmem [shape: f32[1,128], index: 2, kind: input, shape index: {}]
  %s3 = inlined_call_operand.vmem [shape: f32[1,128], index: 3, kind: input, shape index: {}]
  %s4 = inlined_call_operand.vmem [shape: f32[1,128], index: 4, kind: input, shape index: {}]
  %s5 = inlined_call_operand.hbm [shape: f32[512,128], index: 5, kind: output, shape index: {}]
  %s6 = sld [smem:[#allocation0]]
  $region38: #{tpu_custom_call.1} parent=0
    _
  %s8 = ssub.s32 1, %s6
  %s9 = scalar_select 0, %s8, %s6
  $region1: #{tpu_custom_call.1} parent=0
    #allocation2 [shape = 'u8[1048576]{0}', space=vmem, size = 0x100000, scoped, tag = 'input window, operand 0, single buffered']
    #allocation3 [shape = 's32[1]{0}', space=sflag, size = 0x4, scoped, tag = 'scoped memory for tpu_custom_call.1']
    #allocation4 [shape = 's32[1]{0}', space=sflag, size = 0x4, scoped, tag = 'scoped memory for tpu_custom_call.1']
    #allocation5 [shape = 'u8[262144]{0}', space=vmem, size = 0x40000, scoped, tag = 'input window, operand 1, single buffered']
    #allocation6 [shape = 's32[1]{0}', space=sflag, size = 0x4, scoped, tag = 'scoped memory for tpu_custom_call.1']
    #allocation7 [shape = 'u8[262144]{0}', space=vmem, size = 0x40000, scoped, tag = 'output window, operand 0, single buffered']
    %10 = vsyncpa [#allocation3], 0
    %11 = vsyncpa [#allocation6], 0
    %12 = vsyncpa [#allocation4], 0
    // Predicated region
    $region2: #{tpu_custom_call.1} parent=1 // pred_check
      _
    $region3: #{tpu_custom_call.1} parent=1 // pred_check_branch
      %14 = sbr.rel (0) target = $region5
    $region4: #{tpu_custom_call.1} parent=1 // pred_region
      %s16 = ssub.s32 32768, 32768
      %17 = vsyncadd [#allocation3], %s16
      %s18 = sshll.u32 [#allocation2], 4
      %s19 = int_to_ptr.vmem [resolvable:$true] %s18
      %24 = dma.hbm_to_vmem [thread:$0]  %s0, 32768, %s19, [#allocation3], 512, 512, 32
    $region5: #{tpu_custom_call.1} parent=1 // pred_fallthru
      _
    // Predicated region
    $region6: #{tpu_custom_call.1} parent=1 // pred_check
      _
    $region7: #{tpu_custom_call.1} parent=1 // pred_check_branch
      %26 = sbr.rel (0) target = $region9
    $region8: #{tpu_custom_call.1} parent=1 // pred_region
      %s28 = ssub.s32 8192, 8192
      %29 = vsyncadd [#allocation6], %s28
      %s30 = sshll.u32 [#allocation5], 4
      %s31 = int_to_ptr.vmem [resolvable:$true] %s30
      %36 = dma.hbm_to_vmem [thread:$0]  %s1, 8192, %s31, [#allocation6], 128, 128, 8
    $region9: #{tpu_custom_call.1} parent=1 // pred_fallthru
      _
    // Predicated region
    $region10: #{tpu_custom_call.1} parent=1 // pred_check
      _
    $region11: #{tpu_custom_call.1} parent=1 // pred_check_branch
      %38 = sbr.rel (0) target = $region13
    $region12: #{tpu_custom_call.1} parent=1 // pred_region
      _
    $region13: #{tpu_custom_call.1} parent=1 // pred_fallthru
      _
    // Predicated region
    $region14: #{tpu_custom_call.1} parent=1 // pred_check
      _
    $region15: #{tpu_custom_call.1} parent=1 // pred_check_branch
      %40 = sbr.rel (0) target = $region17
    $region16: #{tpu_custom_call.1} parent=1 // pred_region
      _
    $region17: #{tpu_custom_call.1} parent=1 // pred_fallthru
      _
    // Predicated region
    $region18: #{tpu_custom_call.1} parent=1 // pred_check
      _
    $region19: #{tpu_custom_call.1} parent=1 // pred_check_branch
      %42 = sbr.rel (0) target = $region21
    $region20: #{tpu_custom_call.1} parent=1 // pred_region
      _
    $region21: #{tpu_custom_call.1} parent=1 // pred_fallthru
      _
    // Predicated region
    $region22: #{tpu_custom_call.1} parent=1 // pred_check
      _
    $region23: #{tpu_custom_call.1} parent=1 // pred_check_branch
      %44 = sbr.rel (0) target = $region25
    $region24: #{tpu_custom_call.1} parent=1 // pred_region
      %45 = dma.done [#allocation3], 32768
    $region25: #{tpu_custom_call.1} parent=1 // pred_fallthru
      _
    // Predicated region
    $region26: #{tpu_custom_call.1} parent=1 // pred_check
      _
    $region27: #{tpu_custom_call.1} parent=1 // pred_check_branch
      %47 = sbr.rel (0) target = $region29
    $region28: #{tpu_custom_call.1} parent=1 // pred_region
      %48 = dma.done [#allocation6], 8192
    $region29: #{tpu_custom_call.1} parent=1 // pred_fallthru
      _
    %v49 = vld [vmem:[#allocation2] sm:$0xff]
    %v50 = vld [vmem:[#allocation2 + $0x8] sm:$0xff]
    %v51 = vld [vmem:[#allocation2 + $0x10] sm:$0xff]
    %v52 = vld [vmem:[#allocation2 + $0x18] sm:$0xff]
    %v53 = vld [vmem:[#allocation2 + $0x20] sm:$0xff]
    %v54 = vld [vmem:[#allocation2 + $0x28] sm:$0xff]
    %v55 = vld [vmem:[#allocation2 + $0x30] sm:$0xff]
    %v56 = vld [vmem:[#allocation2 + $0x38] sm:$0xff]
    %v57 = vld [vmem:[#allocation2 + $0x40] sm:$0xff]
    %v58 = vld [vmem:[#allocation2 + $0x48] sm:$0xff]
    %v59 = vld [vmem:[#allocation2 + $0x50] sm:$0xff]
    %v60 = vld [vmem:[#allocation2 + $0x58] sm:$0xff]
    %v61 = vld [vmem:[#allocation2 + $0x60] sm:$0xff]
    %v62 = vld [vmem:[#allocation2 + $0x68] sm:$0xff]
    %v63 = vld [vmem:[#allocation2 + $0x70] sm:$0xff]
    %v64 = vld [vmem:[#allocation2 + $0x78] sm:$0xff]
    %v65 = vld [vmem:[#allocation2 + $0x80] sm:$0xff]
    %v66 = vld [vmem:[#allocation2 + $0x88] sm:$0xff]
    %v67 = vld [vmem:[#allocation2 + $0x90] sm:$0xff]
    %v68 = vld [vmem:[#allocation2 + $0x98] sm:$0xff]
    %v69 = vld [vmem:[#allocation2 + $0xa0] sm:$0xff]
    %v70 = vld [vmem:[#allocation2 + $0xa8] sm:$0xff]
    %v71 = vld [vmem:[#allocation2 + $0xb0] sm:$0xff]
    %v72 = vld [vmem:[#allocation2 + $0xb8] sm:$0xff]
    %v73 = vld [vmem:[#allocation2 + $0xc0] sm:$0xff]
    %v74 = vld [vmem:[#allocation2 + $0xc8] sm:$0xff]
    %v75 = vld [vmem:[#allocation2 + $0xd0] sm:$0xff]
    %v76 = vld [vmem:[#allocation2 + $0xd8] sm:$0xff]
    %v77 = vld [vmem:[#allocation2 + $0xe0] sm:$0xff]
    %v78 = vld [vmem:[#allocation2 + $0xe8] sm:$0xff]
    %v79 = vld [vmem:[#allocation2 + $0xf0] sm:$0xff]
    %v80 = vld [vmem:[#allocation2 + $0xf8] sm:$0xff]
    %v81 = vld [vmem:[#allocation2 + $0x100] sm:$0xff]
    %v82 = vld [vmem:[#allocation2 + $0x108] sm:$0xff]
    %v83 = vld [vmem:[#allocation2 + $0x110] sm:$0xff]
    %v84 = vld [vmem:[#allocation2 + $0x118] sm:$0xff]
    %v85 = vld [vmem:[#allocation2 + $0x120] sm:$0xff]
    %v86 = vld [vmem:[#allocation2 + $0x128] sm:$0xff]
    %v87 = vld [vmem:[#allocation2 + $0x130] sm:$0xff]
    %v88 = vld [vmem:[#allocation2 + $0x138] sm:$0xff]
    %v89 = vld [vmem:[#allocation2 + $0x140] sm:$0xff]
    %v90 = vld [vmem:[#allocation2 + $0x148] sm:$0xff]
    %v91 = vld [vmem:[#allocation2 + $0x150] sm:$0xff]
    %v92 = vld [vmem:[#allocation2 + $0x158] sm:$0xff]
    %v93 = vld [vmem:[#allocation2 + $0x160] sm:$0xff]
    %v94 = vld [vmem:[#allocation2 + $0x168] sm:$0xff]
    %v95 = vld [vmem:[#allocation2 + $0x170] sm:$0xff]
    %v96 = vld [vmem:[#allocation2 + $0x178] sm:$0xff]
    %v97 = vld [vmem:[#allocation2 + $0x180] sm:$0xff]
    %v98 = vld [vmem:[#allocation2 + $0x188] sm:$0xff]
    %v99 = vld [vmem:[#allocation2 + $0x190] sm:$0xff]
    %v100 = vld [vmem:[#allocation2 + $0x198] sm:$0xff]
    %v101 = vld [vmem:[#allocation2 + $0x1a0] sm:$0xff]
    %v102 = vld [vmem:[#allocation2 + $0x1a8] sm:$0xff]
    %v103 = vld [vmem:[#allocation2 + $0x1b0] sm:$0xff]
    %v104 = vld [vmem:[#allocation2 + $0x1b8] sm:$0xff]
    %v105 = vld [vmem:[#allocation2 + $0x1c0] sm:$0xff]
    %v106 = vld [vmem:[#allocation2 + $0x1c8] sm:$0xff]
    %v107 = vld [vmem:[#allocation2 + $0x1d0] sm:$0xff]
    %v108 = vld [vmem:[#allocation2 + $0x1d8] sm:$0xff]
    %v109 = vld [vmem:[#allocation2 + $0x1e0] sm:$0xff]
    %v110 = vld [vmem:[#allocation2 + $0x1e8] sm:$0xff]
    %v111 = vld [vmem:[#allocation2 + $0x1f0] sm:$0xff]
    %v112 = vld [vmem:[#allocation2 + $0x1f8] sm:$0xff]
    %v113 = vld [vmem:[#allocation2 + $0x200] sm:$0xff]
    %v114 = vld [vmem:[#allocation2 + $0x208] sm:$0xff]
    %v115 = vld [vmem:[#allocation2 + $0x210] sm:$0xff]
    %v116 = vld [vmem:[#allocation2 + $0x218] sm:$0xff]
    %v117 = vld [vmem:[#allocation2 + $0x220] sm:$0xff]
    %v118 = vld [vmem:[#allocation2 + $0x228] sm:$0xff]
    %v119 = vld [vmem:[#allocation2 + $0x230] sm:$0xff]
    %v120 = vld [vmem:[#allocation2 + $0x238] sm:$0xff]
    %v121 = vld [vmem:[#allocation2 + $0x240] sm:$0xff]
    %v122 = vld [vmem:[#allocation2 + $0x248] sm:$0xff]
    %v123 = vld [vmem:[#allocation2 + $0x250] sm:$0xff]
    %v124 = vld [vmem:[#allocation2 + $0x258] sm:$0xff]
    %v125 = vld [vmem:[#allocation2 + $0x260] sm:$0xff]
    %v126 = vld [vmem:[#allocation2 + $0x268] sm:$0xff]
    %v127 = vld [vmem:[#allocation2 + $0x270] sm:$0xff]
    %v128 = vld [vmem:[#allocation2 + $0x278] sm:$0xff]
    %v129 = vld [vmem:[#allocation2 + $0x280] sm:$0xff]
    %v130 = vld [vmem:[#allocation2 + $0x288] sm:$0xff]
    %v131 = vld [vmem:[#allocation2 + $0x290] sm:$0xff]
    %v132 = vld [vmem:[#allocation2 + $0x298] sm:$0xff]
    %v133 = vld [vmem:[#allocation2 + $0x2a0] sm:$0xff]
    %v134 = vld [vmem:[#allocation2 + $0x2a8] sm:$0xff]
    %v135 = vld [vmem:[#allocation2 + $0x2b0] sm:$0xff]
    %v136 = vld [vmem:[#allocation2 + $0x2b8] sm:$0xff]
    %v137 = vld [vmem:[#allocation2 + $0x2c0] sm:$0xff]
    %v138 = vld [vmem:[#allocation2 + $0x2c8] sm:$0xff]
    %v139 = vld [vmem:[#allocation2 + $0x2d0] sm:$0xff]
    %v140 = vld [vmem:[#allocation2 + $0x2d8] sm:$0xff]
    %v141 = vld [vmem:[#allocation2 + $0x2e0] sm:$0xff]
    %v142 = vld [vmem:[#allocation2 + $0x2e8] sm:$0xff]
    %v143 = vld [vmem:[#allocation2 + $0x2f0] sm:$0xff]
    %v144 = vld [vmem:[#allocation2 + $0x2f8] sm:$0xff]
    %v145 = vld [vmem:[#allocation2 + $0x300] sm:$0xff]
    %v146 = vld [vmem:[#allocation2 + $0x308] sm:$0xff]
    %v147 = vld [vmem:[#allocation2 + $0x310] sm:$0xff]
    %v148 = vld [vmem:[#allocation2 + $0x318] sm:$0xff]
    %v149 = vld [vmem:[#allocation2 + $0x320] sm:$0xff]
    %v150 = vld [vmem:[#allocation2 + $0x328] sm:$0xff]
    %v151 = vld [vmem:[#allocation2 + $0x330] sm:$0xff]
    %v152 = vld [vmem:[#allocation2 + $0x338] sm:$0xff]
    %v153 = vld [vmem:[#allocation2 + $0x340] sm:$0xff]
    %v154 = vld [vmem:[#allocation2 + $0x348] sm:$0xff]
    %v155 = vld [vmem:[#allocation2 + $0x350] sm:$0xff]
    %v156 = vld [vmem:[#allocation2 + $0x358] sm:$0xff]
    %v157 = vld [vmem:[#allocation2 + $0x360] sm:$0xff]
    %v158 = vld [vmem:[#allocation2 + $0x368] sm:$0xff]
    %v159 = vld [vmem:[#allocation2 + $0x370] sm:$0xff]
    %v160 = vld [vmem:[#allocation2 + $0x378] sm:$0xff]
    %v161 = vld [vmem:[#allocation2 + $0x380] sm:$0xff]
    %v162 = vld [vmem:[#allocation2 + $0x388] sm:$0xff]
    %v163 = vld [vmem:[#allocation2 + $0x390] sm:$0xff]
    %v164 = vld [vmem:[#allocation2 + $0x398] sm:$0xff]
    %v165 = vld [vmem:[#allocation2 + $0x3a0] sm:$0xff]
    %v166 = vld [vmem:[#allocation2 + $0x3a8] sm:$0xff]
    %v167 = vld [vmem:[#allocation2 + $0x3b0] sm:$0xff]
    %v168 = vld [vmem:[#allocation2 + $0x3b8] sm:$0xff]
    %v169 = vld [vmem:[#allocation2 + $0x3c0] sm:$0xff]
    %v170 = vld [vmem:[#allocation2 + $0x3c8] sm:$0xff]
    %v171 = vld [vmem:[#allocation2 + $0x3d0] sm:$0xff]
    %v172 = vld [vmem:[#allocation2 + $0x3d8] sm:$0xff]
    %v173 = vld [vmem:[#allocation2 + $0x3e0] sm:$0xff]
    %v174 = vld [vmem:[#allocation2 + $0x3e8] sm:$0xff]
    %v175 = vld [vmem:[#allocation2 + $0x3f0] sm:$0xff]
    %v176 = vld [vmem:[#allocation2 + $0x3f8] sm:$0xff]
    %v177 = vld [vmem:[#allocation2 + $0x400] sm:$0xff]
    %v178 = vld [vmem:[#allocation2 + $0x408] sm:$0xff]
    %v179 = vld [vmem:[#allocation2 + $0x410] sm:$0xff]
    %v180 = vld [vmem:[#allocation2 + $0x418] sm:$0xff]
    %v181 = vld [vmem:[#allocation2 + $0x420] sm:$0xff]
    %v182 = vld [vmem:[#allocation2 + $0x428] sm:$0xff]
    %v183 = vld [vmem:[#allocation2 + $0x430] sm:$0xff]
    %v184 = vld [vmem:[#allocation2 + $0x438] sm:$0xff]
    %v185 = vld [vmem:[#allocation2 + $0x440] sm:$0xff]
    %v186 = vld [vmem:[#allocation2 + $0x448] sm:$0xff]
    %v187 = vld [vmem:[#allocation2 + $0x450] sm:$0xff]
    %v188 = vld [vmem:[#allocation2 + $0x458] sm:$0xff]
    %v189 = vld [vmem:[#allocation2 + $0x460] sm:$0xff]
    %v190 = vld [vmem:[#allocation2 + $0x468] sm:$0xff]
    %v191 = vld [vmem:[#allocation2 + $0x470] sm:$0xff]
    %v192 = vld [vmem:[#allocation2 + $0x478] sm:$0xff]
    %v193 = vld [vmem:[#allocation2 + $0x480] sm:$0xff]
    %v194 = vld [vmem:[#allocation2 + $0x488] sm:$0xff]
    %v195 = vld [vmem:[#allocation2 + $0x490] sm:$0xff]
    %v196 = vld [vmem:[#allocation2 + $0x498] sm:$0xff]
    %v197 = vld [vmem:[#allocation2 + $0x4a0] sm:$0xff]
    %v198 = vld [vmem:[#allocation2 + $0x4a8] sm:$0xff]
    %v199 = vld [vmem:[#allocation2 + $0x4b0] sm:$0xff]
    %v200 = vld [vmem:[#allocation2 + $0x4b8] sm:$0xff]
    %v201 = vld [vmem:[#allocation2 + $0x4c0] sm:$0xff]
    %v202 = vld [vmem:[#allocation2 + $0x4c8] sm:$0xff]
    %v203 = vld [vmem:[#allocation2 + $0x4d0] sm:$0xff]
    %v204 = vld [vmem:[#allocation2 + $0x4d8] sm:$0xff]
    %v205 = vld [vmem:[#allocation2 + $0x4e0] sm:$0xff]
    %v206 = vld [vmem:[#allocation2 + $0x4e8] sm:$0xff]
    %v207 = vld [vmem:[#allocation2 + $0x4f0] sm:$0xff]
    %v208 = vld [vmem:[#allocation2 + $0x4f8] sm:$0xff]
    %v209 = vld [vmem:[#allocation2 + $0x500] sm:$0xff]
    %v210 = vld [vmem:[#allocation2 + $0x508] sm:$0xff]
    %v211 = vld [vmem:[#allocation2 + $0x510] sm:$0xff]
    %v212 = vld [vmem:[#allocation2 + $0x518] sm:$0xff]
    %v213 = vld [vmem:[#allocation2 + $0x520] sm:$0xff]
    %v214 = vld [vmem:[#allocation2 + $0x528] sm:$0xff]
    %v215 = vld [vmem:[#allocation2 + $0x530] sm:$0xff]
    %v216 = vld [vmem:[#allocation2 + $0x538] sm:$0xff]
    %v217 = vld [vmem:[#allocation2 + $0x540] sm:$0xff]
    %v218 = vld [vmem:[#allocation2 + $0x548] sm:$0xff]
    %v219 = vld [vmem:[#allocation2 + $0x550] sm:$0xff]
    %v220 = vld [vmem:[#allocation2 + $0x558] sm:$0xff]
    %v221 = vld [vmem:[#allocation2 + $0x560] sm:$0xff]
    %v222 = vld [vmem:[#allocation2 + $0x568] sm:$0xff]
    %v223 = vld [vmem:[#allocation2 + $0x570] sm:$0xff]
    %v224 = vld [vmem:[#allocation2 + $0x578] sm:$0xff]
    %v225 = vld [vmem:[#allocation2 + $0x580] sm:$0xff]
    %v226 = vld [vmem:[#allocation2 + $0x588] sm:$0xff]
    %v227 = vld [vmem:[#allocation2 + $0x590] sm:$0xff]
    %v228 = vld [vmem:[#allocation2 + $0x598] sm:$0xff]
    %v229 = vld [vmem:[#allocation2 + $0x5a0] sm:$0xff]
    %v230 = vld [vmem:[#allocation2 + $0x5a8] sm:$0xff]
    %v231 = vld [vmem:[#allocation2 + $0x5b0] sm:$0xff]
    %v232 = vld [vmem:[#allocation2 + $0x5b8] sm:$0xff]
    %v233 = vld [vmem:[#allocation2 + $0x5c0] sm:$0xff]
    %v234 = vld [vmem:[#allocation2 + $0x5c8] sm:$0xff]
    %v235 = vld [vmem:[#allocation2 + $0x5d0] sm:$0xff]
    %v236 = vld [vmem:[#allocation2 + $0x5d8] sm:$0xff]
    %v237 = vld [vmem:[#allocation2 + $0x5e0] sm:$0xff]
    %v238 = vld [vmem:[#allocation2 + $0x5e8] sm:$0xff]
    %v239 = vld [vmem:[#allocation2 + $0x5f0] sm:$0xff]
    %v240 = vld [vmem:[#allocation2 + $0x5f8] sm:$0xff]
    %v241 = vld [vmem:[#allocation2 + $0x600] sm:$0xff]
    %v242 = vld [vmem:[#allocation2 + $0x608] sm:$0xff]
    %v243 = vld [vmem:[#allocation2 + $0x610] sm:$0xff]
    %v244 = vld [vmem:[#allocation2 + $0x618] sm:$0xff]
    %v245 = vld [vmem:[#allocation2 + $0x620] sm:$0xff]
    %v246 = vld [vmem:[#allocation2 + $0x628] sm:$0xff]
    %v247 = vld [vmem:[#allocation2 + $0x630] sm:$0xff]
    %v248 = vld [vmem:[#allocation2 + $0x638] sm:$0xff]
    %v249 = vld [vmem:[#allocation2 + $0x640] sm:$0xff]
    %v250 = vld [vmem:[#allocation2 + $0x648] sm:$0xff]
    %v251 = vld [vmem:[#allocation2 + $0x650] sm:$0xff]
    %v252 = vld [vmem:[#allocation2 + $0x658] sm:$0xff]
    %v253 = vld [vmem:[#allocation2 + $0x660] sm:$0xff]
    %v254 = vld [vmem:[#allocation2 + $0x668] sm:$0xff]
    %v255 = vld [vmem:[#allocation2 + $0x670] sm:$0xff]
    %v256 = vld [vmem:[#allocation2 + $0x678] sm:$0xff]
    %v257 = vld [vmem:[#allocation2 + $0x680] sm:$0xff]
    %v258 = vld [vmem:[#allocation2 + $0x688] sm:$0xff]
    %v259 = vld [vmem:[#allocation2 + $0x690] sm:$0xff]
    %v260 = vld [vmem:[#allocation2 + $0x698] sm:$0xff]
    %v261 = vld [vmem:[#allocation2 + $0x6a0] sm:$0xff]
    %v262 = vld [vmem:[#allocation2 + $0x6a8] sm:$0xff]
    %v263 = vld [vmem:[#allocation2 + $0x6b0] sm:$0xff]
    %v264 = vld [vmem:[#allocation2 + $0x6b8] sm:$0xff]
    %v265 = vld [vmem:[#allocation2 + $0x6c0] sm:$0xff]
    %v266 = vld [vmem:[#allocation2 + $0x6c8] sm:$0xff]
    %v267 = vld [vmem:[#allocation2 + $0x6d0] sm:$0xff]
    %v268 = vld [vmem:[#allocation2 + $0x6d8] sm:$0xff]
    %v269 = vld [vmem:[#allocation2 + $0x6e0] sm:$0xff]
    %v270 = vld [vmem:[#allocation2 + $0x6e8] sm:$0xff]
    %v271 = vld [vmem:[#allocation2 + $0x6f0] sm:$0xff]
    %v272 = vld [vmem:[#allocation2 + $0x6f8] sm:$0xff]
    %v273 = vld [vmem:[#allocation2 + $0x700] sm:$0xff]
    %v274 = vld [vmem:[#allocation2 + $0x708] sm:$0xff]
    %v275 = vld [vmem:[#allocation2 + $0x710] sm:$0xff]
    %v276 = vld [vmem:[#allocation2 + $0x718] sm:$0xff]
    %v277 = vld [vmem:[#allocation2 + $0x720] sm:$0xff]
    %v278 = vld [vmem:[#allocation2 + $0x728] sm:$0xff]
    %v279 = vld [vmem:[#allocation2 + $0x730] sm:$0xff]
    %v280 = vld [vmem:[#allocation2 + $0x738] sm:$0xff]
    %v281 = vld [vmem:[#allocation2 + $0x740] sm:$0xff]
    %v282 = vld [vmem:[#allocation2 + $0x748] sm:$0xff]
    %v283 = vld [vmem:[#allocation2 + $0x750] sm:$0xff]
    %v284 = vld [vmem:[#allocation2 + $0x758] sm:$0xff]
    %v285 = vld [vmem:[#allocation2 + $0x760] sm:$0xff]
    %v286 = vld [vmem:[#allocation2 + $0x768] sm:$0xff]
    %v287 = vld [vmem:[#allocation2 + $0x770] sm:$0xff]
    %v288 = vld [vmem:[#allocation2 + $0x778] sm:$0xff]
    %v289 = vld [vmem:[#allocation2 + $0x780] sm:$0xff]
    %v290 = vld [vmem:[#allocation2 + $0x788] sm:$0xff]
    %v291 = vld [vmem:[#allocation2 + $0x790] sm:$0xff]
    %v292 = vld [vmem:[#allocation2 + $0x798] sm:$0xff]
    %v293 = vld [vmem:[#allocation2 + $0x7a0] sm:$0xff]
    %v294 = vld [vmem:[#allocation2 + $0x7a8] sm:$0xff]
    %v295 = vld [vmem:[#allocation2 + $0x7b0] sm:$0xff]
    %v296 = vld [vmem:[#allocation2 + $0x7b8] sm:$0xff]
    %v297 = vld [vmem:[#allocation2 + $0x7c0] sm:$0xff]
    %v298 = vld [vmem:[#allocation2 + $0x7c8] sm:$0xff]
    %v299 = vld [vmem:[#allocation2 + $0x7d0] sm:$0xff]
    %v300 = vld [vmem:[#allocation2 + $0x7d8] sm:$0xff]
    %v301 = vld [vmem:[#allocation2 + $0x7e0] sm:$0xff]
    %v302 = vld [vmem:[#allocation2 + $0x7e8] sm:$0xff]
    %v303 = vld [vmem:[#allocation2 + $0x7f0] sm:$0xff]
    %v304 = vld [vmem:[#allocation2 + $0x7f8] sm:$0xff]
    %v305 = vld [vmem:[#allocation5] sm:$0xff]
    %v306 = vld [vmem:[#allocation5 + $0x8] sm:$0xff]
    %v307 = vld [vmem:[#allocation5 + $0x10] sm:$0xff]
    %v308 = vld [vmem:[#allocation5 + $0x18] sm:$0xff]
    %v309 = vld [vmem:[#allocation5 + $0x20] sm:$0xff]
    %v310 = vld [vmem:[#allocation5 + $0x28] sm:$0xff]
    %v311 = vld [vmem:[#allocation5 + $0x30] sm:$0xff]
    %v312 = vld [vmem:[#allocation5 + $0x38] sm:$0xff]
    %v313 = vld [vmem:[#allocation5 + $0x40] sm:$0xff]
    %v314 = vld [vmem:[#allocation5 + $0x48] sm:$0xff]
    %v315 = vld [vmem:[#allocation5 + $0x50] sm:$0xff]
    %v316 = vld [vmem:[#allocation5 + $0x58] sm:$0xff]
    %v317 = vld [vmem:[#allocation5 + $0x60] sm:$0xff]
    %v318 = vld [vmem:[#allocation5 + $0x68] sm:$0xff]
    %v319 = vld [vmem:[#allocation5 + $0x70] sm:$0xff]
    %v320 = vld [vmem:[#allocation5 + $0x78] sm:$0xff]
    %v321 = vld [vmem:[#allocation5 + $0x80] sm:$0xff]
    %v322 = vld [vmem:[#allocation5 + $0x88] sm:$0xff]
    %v323 = vld [vmem:[#allocation5 + $0x90] sm:$0xff]
    %v324 = vld [vmem:[#allocation5 + $0x98] sm:$0xff]
    %v325 = vld [vmem:[#allocation5 + $0xa0] sm:$0xff]
    %v326 = vld [vmem:[#allocation5 + $0xa8] sm:$0xff]
    %v327 = vld [vmem:[#allocation5 + $0xb0] sm:$0xff]
    %v328 = vld [vmem:[#allocation5 + $0xb8] sm:$0xff]
    %v329 = vld [vmem:[#allocation5 + $0xc0] sm:$0xff]
    %v330 = vld [vmem:[#allocation5 + $0xc8] sm:$0xff]
    %v331 = vld [vmem:[#allocation5 + $0xd0] sm:$0xff]
    %v332 = vld [vmem:[#allocation5 + $0xd8] sm:$0xff]
    %v333 = vld [vmem:[#allocation5 + $0xe0] sm:$0xff]
    %v334 = vld [vmem:[#allocation5 + $0xe8] sm:$0xff]
    %v335 = vld [vmem:[#allocation5 + $0xf0] sm:$0xff]
    %v336 = vld [vmem:[#allocation5 + $0xf8] sm:$0xff]
    %v337 = vld [vmem:[#allocation5 + $0x100] sm:$0xff]
    %v338 = vld [vmem:[#allocation5 + $0x108] sm:$0xff]
    %v339 = vld [vmem:[#allocation5 + $0x110] sm:$0xff]
    %v340 = vld [vmem:[#allocation5 + $0x118] sm:$0xff]
    %v341 = vld [vmem:[#allocation5 + $0x120] sm:$0xff]
    %v342 = vld [vmem:[#allocation5 + $0x128] sm:$0xff]
    %v343 = vld [vmem:[#allocation5 + $0x130] sm:$0xff]
    %v344 = vld [vmem:[#allocation5 + $0x138] sm:$0xff]
    %v345 = vld [vmem:[#allocation5 + $0x140] sm:$0xff]
    %v346 = vld [vmem:[#allocation5 + $0x148] sm:$0xff]
    %v347 = vld [vmem:[#allocation5 + $0x150] sm:$0xff]
    %v348 = vld [vmem:[#allocation5 + $0x158] sm:$0xff]
    %v349 = vld [vmem:[#allocation5 + $0x160] sm:$0xff]
    %v350 = vld [vmem:[#allocation5 + $0x168] sm:$0xff]
    %v351 = vld [vmem:[#allocation5 + $0x170] sm:$0xff]
    %v352 = vld [vmem:[#allocation5 + $0x178] sm:$0xff]
    %v353 = vld [vmem:[#allocation5 + $0x180] sm:$0xff]
    %v354 = vld [vmem:[#allocation5 + $0x188] sm:$0xff]
    %v355 = vld [vmem:[#allocation5 + $0x190] sm:$0xff]
    %v356 = vld [vmem:[#allocation5 + $0x198] sm:$0xff]
    %v357 = vld [vmem:[#allocation5 + $0x1a0] sm:$0xff]
    %v358 = vld [vmem:[#allocation5 + $0x1a8] sm:$0xff]
    %v359 = vld [vmem:[#allocation5 + $0x1b0] sm:$0xff]
    %v360 = vld [vmem:[#allocation5 + $0x1b8] sm:$0xff]
    %v361 = vld [vmem:[#allocation5 + $0x1c0] sm:$0xff]
    %v362 = vld [vmem:[#allocation5 + $0x1c8] sm:$0xff]
    %v363 = vld [vmem:[#allocation5 + $0x1d0] sm:$0xff]
    %v364 = vld [vmem:[#allocation5 + $0x1d8] sm:$0xff]
    %v365 = vld [vmem:[#allocation5 + $0x1e0] sm:$0xff]
    %v366 = vld [vmem:[#allocation5 + $0x1e8] sm:$0xff]
    %v367 = vld [vmem:[#allocation5 + $0x1f0] sm:$0xff]
    %v368 = vld [vmem:[#allocation5 + $0x1f8] sm:$0xff]
    %369 = vmatprep.subr.mxu0 0.0
    %370 = vmatpush1.msra.mxu0 %v320
    %371 = vmatprep.subr.mxu0 0.0
    %372 = vmatpush1.msra.mxu0 %v319
    %373 = vmatprep.subr.mxu0 0.0
    %374 = vmatpush1.msra.mxu0 %v318
    %375 = vmatprep.subr.mxu0 0.0
    %376 = vmatpush1.msra.mxu0 %v317
    %377 = vmatprep.subr.mxu0 0.0
    %378 = vmatpush1.msra.mxu0 %v316
    %379 = vmatprep.subr.mxu0 0.0
    %380 = vmatpush1.msra.mxu0 %v315
    %381 = vmatprep.subr.mxu0 0.0
    %382 = vmatpush1.msra.mxu0 %v314
    %383 = vmatprep.subr.mxu0 0.0
    %384 = vmatpush1.msra.mxu0 %v313
    %385 = vmatprep.subr.mxu0 0.0
    %386 = vmatpush1.msra.mxu0 %v312
    %387 = vmatprep.subr.mxu0 0.0
    %388 = vmatpush1.msra.mxu0 %v311
    %389 = vmatprep.subr.mxu0 0.0
    %390 = vmatpush1.msra.mxu0 %v310
    %391 = vmatprep.subr.mxu0 0.0
    %392 = vmatpush1.msra.mxu0 %v309
    %393 = vmatprep.subr.mxu0 0.0
    %394 = vmatpush1.msra.mxu0 %v308
    %395 = vmatprep.subr.mxu0 0.0
    %396 = vmatpush1.msra.mxu0 %v307
    %397 = vmatprep.subr.mxu0 0.0
    %398 = vmatpush1.msra.mxu0 %v306
    %399 = vmatprep.subr.mxu0 0.0
    %400 = vmatpush1.msra.mxu0 %v305
    %401 = vmatprep.subr.mxu0 0.0
    %402 = vmatpush2.msra.mxu0 %v336
    %403 = vmatprep.subr.mxu0 0.0
    %404 = vmatpush2.msra.mxu0 %v335
    %405 = vmatprep.subr.mxu0 0.0
    %406 = vmatpush2.msra.mxu0 %v334
    %407 = vmatprep.subr.mxu0 0.0
    %408 = vmatpush2.msra.mxu0 %v333
    %409 = vmatprep.subr.mxu0 0.0
    %410 = vmatpush2.msra.mxu0 %v332
    %411 = vmatprep.subr.mxu0 0.0
    %412 = vmatpush2.msra.mxu0 %v331
    %413 = vmatprep.subr.mxu0 0.0
    %414 = vmatpush2.msra.mxu0 %v330
    %415 = vmatprep.subr.mxu0 0.0
    %416 = vmatpush2.msra.mxu0 %v329
    %417 = vmatprep.subr.mxu0 0.0
    %418 = vmatpush2.msra.mxu0 %v328
    %419 = vmatprep.subr.mxu0 0.0
    %420 = vmatpush2.msra.mxu0 %v327
    %421 = vmatprep.subr.mxu0 0.0
    %422 = vmatpush2.msra.mxu0 %v326
    %423 = vmatprep.subr.mxu0 0.0
    %424 = vmatpush2.msra.mxu0 %v325
    %425 = vmatprep.subr.mxu0 0.0
    %426 = vmatpush2.msra.mxu0 %v324
    %427 = vmatprep.subr.mxu0 0.0
    %428 = vmatpush2.msra.mxu0 %v323
    %429 = vmatprep.subr.mxu0 0.0
    %430 = vmatpush2.msra.mxu0 %v322
    %431 = vmatprep.subr.mxu0 0.0
    %432 = vmatpush2.msra.mxu0 %v321
    %433 = vmatprep.mubr.f32.mxu0 %v50
    %434 = vmatmul.mubr.f32.gmra.mxu0 %v49
    %v435 = vpop.f32.mrf.mxu0
    %v436 = vadd.f32 0.0, %v435
    %v437 = vpop.f32.mrf.mxu0
    %438 = vmatprep.mubr.f32.mxu0 %v54
    %439 = vmatmul.mubr.f32.gmra.mxu0 %v53
    %v440 = vpop.f32.mrf.mxu0
    %v441 = vadd.f32 0.0, %v440
    %v442 = vpop.f32.mrf.mxu0
    %443 = vmatprep.mubr.f32.mxu0 %v58
    %444 = vmatmul.mubr.f32.gmra.mxu0 %v57
    %v445 = vpop.f32.mrf.mxu0
    %v446 = vadd.f32 0.0, %v445
    %v447 = vpop.f32.mrf.mxu0
    %448 = vmatprep.mubr.f32.mxu0 %v62
    %449 = vmatmul.mubr.f32.gmra.mxu0 %v61
    %v450 = vpop.f32.mrf.mxu0
    %v451 = vadd.f32 0.0, %v450
    %v452 = vpop.f32.mrf.mxu0
    %453 = vmatprep.mubr.f32.mxu0 %v66
    %454 = vmatmul.mubr.f32.gmra.mxu0 %v65
    %v455 = vpop.f32.mrf.mxu0
    %v456 = vadd.f32 0.0, %v455
    %v457 = vpop.f32.mrf.mxu0
    %458 = vmatprep.mubr.f32.mxu0 %v70
    %459 = vmatmul.mubr.f32.gmra.mxu0 %v69
    %v460 = vpop.f32.mrf.mxu0
    %v461 = vadd.f32 0.0, %v460
    %v462 = vpop.f32.mrf.mxu0
    %463 = vmatprep.mubr.f32.mxu0 %v74
    %464 = vmatmul.mubr.f32.gmra.mxu0 %v73
    %v465 = vpop.f32.mrf.mxu0
    %v466 = vadd.f32 0.0, %v465
    %v467 = vpop.f32.mrf.mxu0
    %468 = vmatprep.mubr.f32.mxu0 %v78
    %469 = vmatmul.mubr.f32.gmra.mxu0 %v77
    %v470 = vpop.f32.mrf.mxu0
    %v471 = vadd.f32 0.0, %v470
    %v472 = vpop.f32.mrf.mxu0
    %473 = vmatprep.mubr.f32.mxu0 %v82
    %474 = vmatmul.mubr.f32.gmra.mxu0 %v81
    %v475 = vpop.f32.mrf.mxu0
    %v476 = vadd.f32 0.0, %v475
    %v477 = vpop.f32.mrf.mxu0
    %478 = vmatprep.mubr.f32.mxu0 %v86
    %479 = vmatmul.mubr.f32.gmra.mxu0 %v85
    %v480 = vpop.f32.mrf.mxu0
    %v481 = vadd.f32 0.0, %v480
    %v482 = vpop.f32.mrf.mxu0
    %483 = vmatprep.mubr.f32.mxu0 %v90
    %484 = vmatmul.mubr.f32.gmra.mxu0 %v89
    %v485 = vpop.f32.mrf.mxu0
    %v486 = vadd.f32 0.0, %v485
    %v487 = vpop.f32.mrf.mxu0
    %488 = vmatprep.mubr.f32.mxu0 %v94
    %489 = vmatmul.mubr.f32.gmra.mxu0 %v93
    %v490 = vpop.f32.mrf.mxu0
    %v491 = vadd.f32 0.0, %v490
    %v492 = vpop.f32.mrf.mxu0
    %493 = vmatprep.mubr.f32.mxu0 %v98
    %494 = vmatmul.mubr.f32.gmra.mxu0 %v97
    %v495 = vpop.f32.mrf.mxu0
    %v496 = vadd.f32 0.0, %v495
    %v497 = vpop.f32.mrf.mxu0
    %498 = vmatprep.mubr.f32.mxu0 %v102
    %499 = vmatmul.mubr.f32.gmra.mxu0 %v101
    %v500 = vpop.f32.mrf.mxu0
    %v501 = vadd.f32 0.0, %v500
    %v502 = vpop.f32.mrf.mxu0
    %503 = vmatprep.mubr.f32.mxu0 %v106
    %504 = vmatmul.mubr.f32.gmra.mxu0 %v105
    %v505 = vpop.f32.mrf.mxu0
    %v506 = vadd.f32 0.0, %v505
    %v507 = vpop.f32.mrf.mxu0
    %508 = vmatprep.mubr.f32.mxu0 %v110
    %509 = vmatmul.mubr.f32.gmra.mxu0 %v109
    %v510 = vpop.f32.mrf.mxu0
    %v511 = vadd.f32 0.0, %v510
    %v512 = vpop.f32.mrf.mxu0
    %513 = vmatprep.mubr.f32.mxu0 %v114
    %514 = vmatmul.mubr.f32.gmra.mxu0 %v113
    %v515 = vpop.f32.mrf.mxu0
    %v516 = vadd.f32 0.0, %v515
    %v517 = vpop.f32.mrf.mxu0
    %518 = vmatprep.mubr.f32.mxu0 %v118
    %519 = vmatmul.mubr.f32.gmra.mxu0 %v117
    %v520 = vpop.f32.mrf.mxu0
    %v521 = vadd.f32 0.0, %v520
    %v522 = vpop.f32.mrf.mxu0
    %523 = vmatprep.mubr.f32.mxu0 %v122
    %524 = vmatmul.mubr.f32.gmra.mxu0 %v121
    %v525 = vpop.f32.mrf.mxu0
    %v526 = vadd.f32 0.0, %v525
    %v527 = vpop.f32.mrf.mxu0
    %528 = vmatprep.mubr.f32.mxu0 %v126
    %529 = vmatmul.mubr.f32.gmra.mxu0 %v125
    %v530 = vpop.f32.mrf.mxu0
    %v531 = vadd.f32 0.0, %v530
    %v532 = vpop.f32.mrf.mxu0
    %533 = vmatprep.mubr.f32.mxu0 %v130
    %534 = vmatmul.mubr.f32.gmra.mxu0 %v129
    %v535 = vpop.f32.mrf.mxu0
    %v536 = vadd.f32 0.0, %v535
    %v537 = vpop.f32.mrf.mxu0
    %538 = vmatprep.mubr.f32.mxu0 %v134
    %539 = vmatmul.mubr.f32.gmra.mxu0 %v133
    %v540 = vpop.f32.mrf.mxu0
    %v541 = vadd.f32 0.0, %v540
    %v542 = vpop.f32.mrf.mxu0
    %543 = vmatprep.mubr.f32.mxu0 %v138
    %544 = vmatmul.mubr.f32.gmra.mxu0 %v137
    %v545 = vpop.f32.mrf.mxu0
    %v546 = vadd.f32 0.0, %v545
    %v547 = vpop.f32.mrf.mxu0
    %548 = vmatprep.mubr.f32.mxu0 %v142
    %549 = vmatmul.mubr.f32.gmra.mxu0 %v141
    %v550 = vpop.f32.mrf.mxu0
    %v551 = vadd.f32 0.0, %v550
    %v552 = vpop.f32.mrf.mxu0
    %553 = vmatprep.mubr.f32.mxu0 %v146
    %554 = vmatmul.mubr.f32.gmra.mxu0 %v145
    %v555 = vpop.f32.mrf.mxu0
    %v556 = vadd.f32 0.0, %v555
    %v557 = vpop.f32.mrf.mxu0
    %558 = vmatprep.mubr.f32.mxu0 %v150
    %559 = vmatmul.mubr.f32.gmra.mxu0 %v149
    %v560 = vpop.f32.mrf.mxu0
    %v561 = vadd.f32 0.0, %v560
    %v562 = vpop.f32.mrf.mxu0
    %563 = vmatprep.mubr.f32.mxu0 %v154
    %564 = vmatmul.mubr.f32.gmra.mxu0 %v153
    %v565 = vpop.f32.mrf.mxu0
    %v566 = vadd.f32 0.0, %v565
    %v567 = vpop.f32.mrf.mxu0
    %568 = vmatprep.mubr.f32.mxu0 %v158
    %569 = vmatmul.mubr.f32.gmra.mxu0 %v157
    %v570 = vpop.f32.mrf.mxu0
    %v571 = vadd.f32 0.0, %v570
    %v572 = vpop.f32.mrf.mxu0
    %573 = vmatprep.mubr.f32.mxu0 %v162
    %574 = vmatmul.mubr.f32.gmra.mxu0 %v161
    %v575 = vpop.f32.mrf.mxu0
    %v576 = vadd.f32 0.0, %v575
    %v577 = vpop.f32.mrf.mxu0
    %578 = vmatprep.mubr.f32.mxu0 %v166
    %579 = vmatmul.mubr.f32.gmra.mxu0 %v165
    %v580 = vpop.f32.mrf.mxu0
    %v581 = vadd.f32 0.0, %v580
    %v582 = vpop.f32.mrf.mxu0
    %583 = vmatprep.mubr.f32.mxu0 %v170
    %584 = vmatmul.mubr.f32.gmra.mxu0 %v169
    %v585 = vpop.f32.mrf.mxu0
    %v586 = vadd.f32 0.0, %v585
    %v587 = vpop.f32.mrf.mxu0
    %588 = vmatprep.mubr.f32.mxu0 %v174
    %589 = vmatmul.mubr.f32.gmra.mxu0 %v173
    %v590 = vpop.f32.mrf.mxu0
    %v591 = vadd.f32 0.0, %v590
    %v592 = vpop.f32.mrf.mxu0
    %593 = vmatprep.mubr.f32.mxu0 %v178
    %594 = vmatmul.mubr.f32.gmra.mxu0 %v177
    %v595 = vpop.f32.mrf.mxu0
    %v596 = vadd.f32 0.0, %v595
    %v597 = vpop.f32.mrf.mxu0
    %598 = vmatprep.mubr.f32.mxu0 %v182
    %599 = vmatmul.mubr.f32.gmra.mxu0 %v181
    %v600 = vpop.f32.mrf.mxu0
    %v601 = vadd.f32 0.0, %v600
    %v602 = vpop.f32.mrf.mxu0
    %603 = vmatprep.mubr.f32.mxu0 %v186
    %604 = vmatmul.mubr.f32.gmra.mxu0 %v185
    %v605 = vpop.f32.mrf.mxu0
    %v606 = vadd.f32 0.0, %v605
    %v607 = vpop.f32.mrf.mxu0
    %608 = vmatprep.mubr.f32.mxu0 %v190
    %609 = vmatmul.mubr.f32.gmra.mxu0 %v189
    %v610 = vpop.f32.mrf.mxu0
    %v611 = vadd.f32 0.0, %v610
    %v612 = vpop.f32.mrf.mxu0
    %613 = vmatprep.mubr.f32.mxu0 %v194
    %614 = vmatmul.mubr.f32.gmra.mxu0 %v193
    %v615 = vpop.f32.mrf.mxu0
    %v616 = vadd.f32 0.0, %v615
    %v617 = vpop.f32.mrf.mxu0
    %618 = vmatprep.mubr.f32.mxu0 %v198
    %619 = vmatmul.mubr.f32.gmra.mxu0 %v197
    %v620 = vpop.f32.mrf.mxu0
    %v621 = vadd.f32 0.0, %v620
    %v622 = vpop.f32.mrf.mxu0
    %623 = vmatprep.mubr.f32.mxu0 %v202
    %624 = vmatmul.mubr.f32.gmra.mxu0 %v201
    %v625 = vpop.f32.mrf.mxu0
    %v626 = vadd.f32 0.0, %v625
    %v627 = vpop.f32.mrf.mxu0
    %628 = vmatprep.mubr.f32.mxu0 %v206
    %629 = vmatmul.mubr.f32.gmra.mxu0 %v205
    %v630 = vpop.f32.mrf.mxu0
    %v631 = vadd.f32 0.0, %v630
    %v632 = vpop.f32.mrf.mxu0
    %633 = vmatprep.mubr.f32.mxu0 %v210
    %634 = vmatmul.mubr.f32.gmra.mxu0 %v209
    %v635 = vpop.f32.mrf.mxu0
    %v636 = vadd.f32 0.0, %v635
    %v637 = vpop.f32.mrf.mxu0
    %638 = vmatprep.mubr.f32.mxu0 %v214
    %639 = vmatmul.mubr.f32.gmra.mxu0 %v213
    %v640 = vpop.f32.mrf.mxu0
    %v641 = vadd.f32 0.0, %v640
    %v642 = vpop.f32.mrf.mxu0
    %643 = vmatprep.mubr.f32.mxu0 %v218
    %644 = vmatmul.mubr.f32.gmra.mxu0 %v217
    %v645 = vpop.f32.mrf.mxu0
    %v646 = vadd.f32 0.0, %v645
    %v647 = vpop.f32.mrf.mxu0
    %648 = vmatprep.mubr.f32.mxu0 %v222
    %649 = vmatmul.mubr.f32.gmra.mxu0 %v221
    %v650 = vpop.f32.mrf.mxu0
    %v651 = vadd.f32 0.0, %v650
    %v652 = vpop.f32.mrf.mxu0
    %653 = vmatprep.mubr.f32.mxu0 %v226
    %654 = vmatmul.mubr.f32.gmra.mxu0 %v225
    %v655 = vpop.f32.mrf.mxu0
    %v656 = vadd.f32 0.0, %v655
    %v657 = vpop.f32.mrf.mxu0
    %658 = vmatprep.mubr.f32.mxu0 %v230
    %659 = vmatmul.mubr.f32.gmra.mxu0 %v229
    %v660 = vpop.f32.mrf.mxu0
    %v661 = vadd.f32 0.0, %v660
    %v662 = vpop.f32.mrf.mxu0
    %663 = vmatprep.mubr.f32.mxu0 %v234
    %664 = vmatmul.mubr.f32.gmra.mxu0 %v233
    %v665 = vpop.f32.mrf.mxu0
    %v666 = vadd.f32 0.0, %v665
    %v667 = vpop.f32.mrf.mxu0
    %668 = vmatprep.mubr.f32.mxu0 %v238
    %669 = vmatmul.mubr.f32.gmra.mxu0 %v237
    %v670 = vpop.f32.mrf.mxu0
    %v671 = vadd.f32 0.0, %v670
    %v672 = vpop.f32.mrf.mxu0
    %673 = vmatprep.mubr.f32.mxu0 %v242
    %674 = vmatmul.mubr.f32.gmra.mxu0 %v241
    %v675 = vpop.f32.mrf.mxu0
    %v676 = vadd.f32 0.0, %v675
    %v677 = vpop.f32.mrf.mxu0
    %678 = vmatprep.mubr.f32.mxu0 %v246
    %679 = vmatmul.mubr.f32.gmra.mxu0 %v245
    %v680 = vpop.f32.mrf.mxu0
    %v681 = vadd.f32 0.0, %v680
    %v682 = vpop.f32.mrf.mxu0
    %683 = vmatprep.mubr.f32.mxu0 %v250
    %684 = vmatmul.mubr.f32.gmra.mxu0 %v249
    %v685 = vpop.f32.mrf.mxu0
    %v686 = vadd.f32 0.0, %v685
    %v687 = vpop.f32.mrf.mxu0
    %688 = vmatprep.mubr.f32.mxu0 %v254
    %689 = vmatmul.mubr.f32.gmra.mxu0 %v253
    %v690 = vpop.f32.mrf.mxu0
    %v691 = vadd.f32 0.0, %v690
    %v692 = vpop.f32.mrf.mxu0
    %693 = vmatprep.mubr.f32.mxu0 %v258
    %694 = vmatmul.mubr.f32.gmra.mxu0 %v257
    %v695 = vpop.f32.mrf.mxu0
    %v696 = vadd.f32 0.0, %v695
    %v697 = vpop.f32.mrf.mxu0
    %698 = vmatprep.mubr.f32.mxu0 %v262
    %699 = vmatmul.mubr.f32.gmra.mxu0 %v261
    %v700 = vpop.f32.mrf.mxu0
    %v701 = vadd.f32 0.0, %v700
    %v702 = vpop.f32.mrf.mxu0
    %703 = vmatprep.mubr.f32.mxu0 %v266
    %704 = vmatmul.mubr.f32.gmra.mxu0 %v265
    %v705 = vpop.f32.mrf.mxu0
    %v706 = vadd.f32 0.0, %v705
    %v707 = vpop.f32.mrf.mxu0
    %708 = vmatprep.mubr.f32.mxu0 %v270
    %709 = vmatmul.mubr.f32.gmra.mxu0 %v269
    %v710 = vpop.f32.mrf.mxu0
    %v711 = vadd.f32 0.0, %v710
    %v712 = vpop.f32.mrf.mxu0
    %713 = vmatprep.mubr.f32.mxu0 %v274
    %714 = vmatmul.mubr.f32.gmra.mxu0 %v273
    %v715 = vpop.f32.mrf.mxu0
    %v716 = vadd.f32 0.0, %v715
    %v717 = vpop.f32.mrf.mxu0
    %718 = vmatprep.mubr.f32.mxu0 %v278
    %719 = vmatmul.mubr.f32.gmra.mxu0 %v277
    %v720 = vpop.f32.mrf.mxu0
    %v721 = vadd.f32 0.0, %v720
    %v722 = vpop.f32.mrf.mxu0
    %723 = vmatprep.mubr.f32.mxu0 %v282
    %724 = vmatmul.mubr.f32.gmra.mxu0 %v281
    %v725 = vpop.f32.mrf.mxu0
    %v726 = vadd.f32 0.0, %v725
    %v727 = vpop.f32.mrf.mxu0
    %728 = vmatprep.mubr.f32.mxu0 %v286
    %729 = vmatmul.mubr.f32.gmra.mxu0 %v285
    %v730 = vpop.f32.mrf.mxu0
    %v731 = vadd.f32 0.0, %v730
    %v732 = vpop.f32.mrf.mxu0
    %733 = vmatprep.mubr.f32.mxu0 %v290
    %734 = vmatmul.mubr.f32.gmra.mxu0 %v289
    %v735 = vpop.f32.mrf.mxu0
    %v736 = vadd.f32 0.0, %v735
    %v737 = vpop.f32.mrf.mxu0
    %738 = vmatprep.mubr.f32.mxu0 %v294
    %739 = vmatmul.mubr.f32.gmra.mxu0 %v293
    %v740 = vpop.f32.mrf.mxu0
    %v741 = vadd.f32 0.0, %v740
    %v742 = vpop.f32.mrf.mxu0
    %743 = vmatprep.mubr.f32.mxu0 %v298
    %744 = vmatmul.mubr.f32.gmra.mxu0 %v297
    %v745 = vpop.f32.mrf.mxu0
    %v746 = vadd.f32 0.0, %v745
    %v747 = vpop.f32.mrf.mxu0
    %748 = vmatprep.mubr.f32.mxu0 %v302
    %749 = vmatmul.mubr.f32.gmra.mxu0 %v301
    %v750 = vpop.f32.mrf.mxu0
    %v751 = vadd.f32 0.0, %v750
    %v752 = vpop.f32.mrf.mxu0
    %753 = vdwg.mxu0
    %754 = vmatprep.subr.mxu0 0.0
    %755 = vmatpush1.msra.mxu0 %v352
    %756 = vmatprep.subr.mxu0 0.0
    %757 = vmatpush1.msra.mxu0 %v351
    %758 = vmatprep.subr.mxu0 0.0
    %759 = vmatpush1.msra.mxu0 %v350
    %760 = vmatprep.subr.mxu0 0.0
    %761 = vmatpush1.msra.mxu0 %v349
    %762 = vmatprep.subr.mxu0 0.0
    %763 = vmatpush1.msra.mxu0 %v348
    %764 = vmatprep.subr.mxu0 0.0
    %765 = vmatpush1.msra.mxu0 %v347
    %766 = vmatprep.subr.mxu0 0.0
    %767 = vmatpush1.msra.mxu0 %v346
    %768 = vmatprep.subr.mxu0 0.0
    %769 = vmatpush1.msra.mxu0 %v345
    %770 = vmatprep.subr.mxu0 0.0
    %771 = vmatpush1.msra.mxu0 %v344
    %772 = vmatprep.subr.mxu0 0.0
    %773 = vmatpush1.msra.mxu0 %v343
    %774 = vmatprep.subr.mxu0 0.0
    %775 = vmatpush1.msra.mxu0 %v342
    %776 = vmatprep.subr.mxu0 0.0
    %777 = vmatpush1.msra.mxu0 %v341
    %778 = vmatprep.subr.mxu0 0.0
    %779 = vmatpush1.msra.mxu0 %v340
    %780 = vmatprep.subr.mxu0 0.0
    %781 = vmatpush1.msra.mxu0 %v339
    %782 = vmatprep.subr.mxu0 0.0
    %783 = vmatpush1.msra.mxu0 %v338
    %784 = vmatprep.subr.mxu0 0.0
    %785 = vmatpush1.msra.mxu0 %v337
    %786 = vmatprep.subr.mxu0 0.0
    %787 = vmatpush2.msra.mxu0 %v368
    %788 = vmatprep.subr.mxu0 0.0
    %789 = vmatpush2.msra.mxu0 %v367
    %790 = vmatprep.subr.mxu0 0.0
    %791 = vmatpush2.msra.mxu0 %v366
    %792 = vmatprep.subr.mxu0 0.0
    %793 = vmatpush2.msra.mxu0 %v365
    %794 = vmatprep.subr.mxu0 0.0
    %795 = vmatpush2.msra.mxu0 %v364
    %796 = vmatprep.subr.mxu0 0.0
    %797 = vmatpush2.msra.mxu0 %v363
    %798 = vmatprep.subr.mxu0 0.0
    %799 = vmatpush2.msra.mxu0 %v362
    %800 = vmatprep.subr.mxu0 0.0
    %801 = vmatpush2.msra.mxu0 %v361
    %802 = vmatprep.subr.mxu0 0.0
    %803 = vmatpush2.msra.mxu0 %v360
    %804 = vmatprep.subr.mxu0 0.0
    %805 = vmatpush2.msra.mxu0 %v359
    %806 = vmatprep.subr.mxu0 0.0
    %807 = vmatpush2.msra.mxu0 %v358
    %808 = vmatprep.subr.mxu0 0.0
    %809 = vmatpush2.msra.mxu0 %v357
    %810 = vmatprep.subr.mxu0 0.0
    %811 = vmatpush2.msra.mxu0 %v356
    %812 = vmatprep.subr.mxu0 0.0
    %813 = vmatpush2.msra.mxu0 %v355
    %814 = vmatprep.subr.mxu0 0.0
    %815 = vmatpush2.msra.mxu0 %v354
    %816 = vmatprep.subr.mxu0 0.0
    %817 = vmatpush2.msra.mxu0 %v353
    %818 = vmatprep.mubr.f32.mxu0 %v52
    %819 = vmatmul.mubr.f32.gmra.mxu0 %v51
    %v820 = vpop.f32.mrf.mxu0
    %v821 = vadd.f32 %v436, %v820
    %v822 = vpop.f32.mrf.mxu0
    %823 = vmatprep.mubr.f32.mxu0 %v56
    %824 = vmatmul.mubr.f32.gmra.mxu0 %v55
    %v825 = vpop.f32.mrf.mxu0
    %v826 = vadd.f32 %v441, %v825
    %v827 = vpop.f32.mrf.mxu0
    %828 = vmatprep.mubr.f32.mxu0 %v60
    %829 = vmatmul.mubr.f32.gmra.mxu0 %v59
    %v830 = vpop.f32.mrf.mxu0
    %v831 = vadd.f32 %v446, %v830
    %v832 = vpop.f32.mrf.mxu0
    %833 = vmatprep.mubr.f32.mxu0 %v64
    %834 = vmatmul.mubr.f32.gmra.mxu0 %v63
    %v835 = vpop.f32.mrf.mxu0
    %v836 = vadd.f32 %v451, %v835
    %v837 = vpop.f32.mrf.mxu0
    %838 = vmatprep.mubr.f32.mxu0 %v68
    %839 = vmatmul.mubr.f32.gmra.mxu0 %v67
    %v840 = vpop.f32.mrf.mxu0
    %v841 = vadd.f32 %v456, %v840
    %v842 = vpop.f32.mrf.mxu0
    %843 = vmatprep.mubr.f32.mxu0 %v72
    %844 = vmatmul.mubr.f32.gmra.mxu0 %v71
    %v845 = vpop.f32.mrf.mxu0
    %v846 = vadd.f32 %v461, %v845
    %v847 = vpop.f32.mrf.mxu0
    %848 = vmatprep.mubr.f32.mxu0 %v76
    %849 = vmatmul.mubr.f32.gmra.mxu0 %v75
    %v850 = vpop.f32.mrf.mxu0
    %v851 = vadd.f32 %v466, %v850
    %v852 = vpop.f32.mrf.mxu0
    %853 = vmatprep.mubr.f32.mxu0 %v80
    %854 = vmatmul.mubr.f32.gmra.mxu0 %v79
    %v855 = vpop.f32.mrf.mxu0
    %v856 = vadd.f32 %v471, %v855
    %v857 = vpop.f32.mrf.mxu0
    %858 = vmatprep.mubr.f32.mxu0 %v84
    %859 = vmatmul.mubr.f32.gmra.mxu0 %v83
    %v860 = vpop.f32.mrf.mxu0
    %v861 = vadd.f32 %v476, %v860
    %v862 = vpop.f32.mrf.mxu0
    %863 = vmatprep.mubr.f32.mxu0 %v88
    %864 = vmatmul.mubr.f32.gmra.mxu0 %v87
    %v865 = vpop.f32.mrf.mxu0
    %v866 = vadd.f32 %v481, %v865
    %v867 = vpop.f32.mrf.mxu0
    %868 = vmatprep.mubr.f32.mxu0 %v92
    %869 = vmatmul.mubr.f32.gmra.mxu0 %v91
    %v870 = vpop.f32.mrf.mxu0
    %v871 = vadd.f32 %v486, %v870
    %v872 = vpop.f32.mrf.mxu0
    %873 = vmatprep.mubr.f32.mxu0 %v96
    %874 = vmatmul.mubr.f32.gmra.mxu0 %v95
    %v875 = vpop.f32.mrf.mxu0
    %v876 = vadd.f32 %v491, %v875
    %v877 = vpop.f32.mrf.mxu0
    %878 = vmatprep.mubr.f32.mxu0 %v100
    %879 = vmatmul.mubr.f32.gmra.mxu0 %v99
    %v880 = vpop.f32.mrf.mxu0
    %v881 = vadd.f32 %v496, %v880
    %v882 = vpop.f32.mrf.mxu0
    %883 = vmatprep.mubr.f32.mxu0 %v104
    %884 = vmatmul.mubr.f32.gmra.mxu0 %v103
    %v885 = vpop.f32.mrf.mxu0
    %v886 = vadd.f32 %v501, %v885
    %v887 = vpop.f32.mrf.mxu0
    %888 = vmatprep.mubr.f32.mxu0 %v108
    %889 = vmatmul.mubr.f32.gmra.mxu0 %v107
    %v890 = vpop.f32.mrf.mxu0
    %v891 = vadd.f32 %v506, %v890
    %v892 = vpop.f32.mrf.mxu0
    %893 = vmatprep.mubr.f32.mxu0 %v112
    %894 = vmatmul.mubr.f32.gmra.mxu0 %v111
    %v895 = vpop.f32.mrf.mxu0
    %v896 = vadd.f32 %v511, %v895
    %v897 = vpop.f32.mrf.mxu0
    %898 = vmatprep.mubr.f32.mxu0 %v116
    %899 = vmatmul.mubr.f32.gmra.mxu0 %v115
    %v900 = vpop.f32.mrf.mxu0
    %v901 = vadd.f32 %v516, %v900
    %v902 = vpop.f32.mrf.mxu0
    %903 = vmatprep.mubr.f32.mxu0 %v120
    %904 = vmatmul.mubr.f32.gmra.mxu0 %v119
    %v905 = vpop.f32.mrf.mxu0
    %v906 = vadd.f32 %v521, %v905
    %v907 = vpop.f32.mrf.mxu0
    %908 = vmatprep.mubr.f32.mxu0 %v124
    %909 = vmatmul.mubr.f32.gmra.mxu0 %v123
    %v910 = vpop.f32.mrf.mxu0
    %v911 = vadd.f32 %v526, %v910
    %v912 = vpop.f32.mrf.mxu0
    %913 = vmatprep.mubr.f32.mxu0 %v128
    %914 = vmatmul.mubr.f32.gmra.mxu0 %v127
    %v915 = vpop.f32.mrf.mxu0
    %v916 = vadd.f32 %v531, %v915
    %v917 = vpop.f32.mrf.mxu0
    %918 = vmatprep.mubr.f32.mxu0 %v132
    %919 = vmatmul.mubr.f32.gmra.mxu0 %v131
    %v920 = vpop.f32.mrf.mxu0
    %v921 = vadd.f32 %v536, %v920
    %v922 = vpop.f32.mrf.mxu0
    %923 = vmatprep.mubr.f32.mxu0 %v136
    %924 = vmatmul.mubr.f32.gmra.mxu0 %v135
    %v925 = vpop.f32.mrf.mxu0
    %v926 = vadd.f32 %v541, %v925
    %v927 = vpop.f32.mrf.mxu0
    %928 = vmatprep.mubr.f32.mxu0 %v140
    %929 = vmatmul.mubr.f32.gmra.mxu0 %v139
    %v930 = vpop.f32.mrf.mxu0
    %v931 = vadd.f32 %v546, %v930
    %v932 = vpop.f32.mrf.mxu0
    %933 = vmatprep.mubr.f32.mxu0 %v144
    %934 = vmatmul.mubr.f32.gmra.mxu0 %v143
    %v935 = vpop.f32.mrf.mxu0
    %v936 = vadd.f32 %v551, %v935
    %v937 = vpop.f32.mrf.mxu0
    %938 = vmatprep.mubr.f32.mxu0 %v148
    %939 = vmatmul.mubr.f32.gmra.mxu0 %v147
    %v940 = vpop.f32.mrf.mxu0
    %v941 = vadd.f32 %v556, %v940
    %v942 = vpop.f32.mrf.mxu0
    %943 = vmatprep.mubr.f32.mxu0 %v152
    %944 = vmatmul.mubr.f32.gmra.mxu0 %v151
    %v945 = vpop.f32.mrf.mxu0
    %v946 = vadd.f32 %v561, %v945
    %v947 = vpop.f32.mrf.mxu0
    %948 = vmatprep.mubr.f32.mxu0 %v156
    %949 = vmatmul.mubr.f32.gmra.mxu0 %v155
    %v950 = vpop.f32.mrf.mxu0
    %v951 = vadd.f32 %v566, %v950
    %v952 = vpop.f32.mrf.mxu0
    %953 = vmatprep.mubr.f32.mxu0 %v160
    %954 = vmatmul.mubr.f32.gmra.mxu0 %v159
    %v955 = vpop.f32.mrf.mxu0
    %v956 = vadd.f32 %v571, %v955
    %v957 = vpop.f32.mrf.mxu0
    %958 = vmatprep.mubr.f32.mxu0 %v164
    %959 = vmatmul.mubr.f32.gmra.mxu0 %v163
    %v960 = vpop.f32.mrf.mxu0
    %v961 = vadd.f32 %v576, %v960
    %v962 = vpop.f32.mrf.mxu0
    %963 = vmatprep.mubr.f32.mxu0 %v168
    %964 = vmatmul.mubr.f32.gmra.mxu0 %v167
    %v965 = vpop.f32.mrf.mxu0
    %v966 = vadd.f32 %v581, %v965
    %v967 = vpop.f32.mrf.mxu0
    %968 = vmatprep.mubr.f32.mxu0 %v172
    %969 = vmatmul.mubr.f32.gmra.mxu0 %v171
    %v970 = vpop.f32.mrf.mxu0
    %v971 = vadd.f32 %v586, %v970
    %v972 = vpop.f32.mrf.mxu0
    %973 = vmatprep.mubr.f32.mxu0 %v176
    %974 = vmatmul.mubr.f32.gmra.mxu0 %v175
    %v975 = vpop.f32.mrf.mxu0
    %v976 = vadd.f32 %v591, %v975
    %v977 = vpop.f32.mrf.mxu0
    %978 = vmatprep.mubr.f32.mxu0 %v180
    %979 = vmatmul.mubr.f32.gmra.mxu0 %v179
    %v980 = vpop.f32.mrf.mxu0
    %v981 = vadd.f32 %v596, %v980
    %v982 = vpop.f32.mrf.mxu0
    %983 = vmatprep.mubr.f32.mxu0 %v184
    %984 = vmatmul.mubr.f32.gmra.mxu0 %v183
    %v985 = vpop.f32.mrf.mxu0
    %v986 = vadd.f32 %v601, %v985
    %v987 = vpop.f32.mrf.mxu0
    %988 = vmatprep.mubr.f32.mxu0 %v188
    %989 = vmatmul.mubr.f32.gmra.mxu0 %v187
    %v990 = vpop.f32.mrf.mxu0
    %v991 = vadd.f32 %v606, %v990
    %v992 = vpop.f32.mrf.mxu0
    %993 = vmatprep.mubr.f32.mxu0 %v192
    %994 = vmatmul.mubr.f32.gmra.mxu0 %v191
    %v995 = vpop.f32.mrf.mxu0
    %v996 = vadd.f32 %v611, %v995
    %v997 = vpop.f32.mrf.mxu0
    %998 = vmatprep.mubr.f32.mxu0 %v196
    %999 = vmatmul.mubr.f32.gmra.mxu0 %v195
    %v1000 = vpop.f32.mrf.mxu0
    %v1001 = vadd.f32 %v616, %v1000
    %v1002 = vpop.f32.mrf.mxu0
    %1003 = vmatprep.mubr.f32.mxu0 %v200
    %1004 = vmatmul.mubr.f32.gmra.mxu0 %v199
    %v1005 = vpop.f32.mrf.mxu0
    %v1006 = vadd.f32 %v621, %v1005
    %v1007 = vpop.f32.mrf.mxu0
    %1008 = vmatprep.mubr.f32.mxu0 %v204
    %1009 = vmatmul.mubr.f32.gmra.mxu0 %v203
    %v1010 = vpop.f32.mrf.mxu0
    %v1011 = vadd.f32 %v626, %v1010
    %v1012 = vpop.f32.mrf.mxu0
    %1013 = vmatprep.mubr.f32.mxu0 %v208
    %1014 = vmatmul.mubr.f32.gmra.mxu0 %v207
    %v1015 = vpop.f32.mrf.mxu0
    %v1016 = vadd.f32 %v631, %v1015
    %v1017 = vpop.f32.mrf.mxu0
    %1018 = vmatprep.mubr.f32.mxu0 %v212
    %1019 = vmatmul.mubr.f32.gmra.mxu0 %v211
    %v1020 = vpop.f32.mrf.mxu0
    %v1021 = vadd.f32 %v636, %v1020
    %v1022 = vpop.f32.mrf.mxu0
    %1023 = vmatprep.mubr.f32.mxu0 %v216
    %1024 = vmatmul.mubr.f32.gmra.mxu0 %v215
    %v1025 = vpop.f32.mrf.mxu0
    %v1026 = vadd.f32 %v641, %v1025
    %v1027 = vpop.f32.mrf.mxu0
    %1028 = vmatprep.mubr.f32.mxu0 %v220
    %1029 = vmatmul.mubr.f32.gmra.mxu0 %v219
    %v1030 = vpop.f32.mrf.mxu0
    %v1031 = vadd.f32 %v646, %v1030
    %v1032 = vpop.f32.mrf.mxu0
    %1033 = vmatprep.mubr.f32.mxu0 %v224
    %1034 = vmatmul.mubr.f32.gmra.mxu0 %v223
    %v1035 = vpop.f32.mrf.mxu0
    %v1036 = vadd.f32 %v651, %v1035
    %v1037 = vpop.f32.mrf.mxu0
    %1038 = vmatprep.mubr.f32.mxu0 %v228
    %1039 = vmatmul.mubr.f32.gmra.mxu0 %v227
    %v1040 = vpop.f32.mrf.mxu0
    %v1041 = vadd.f32 %v656, %v1040
    %v1042 = vpop.f32.mrf.mxu0
    %1043 = vmatprep.mubr.f32.mxu0 %v232
    %1044 = vmatmul.mubr.f32.gmra.mxu0 %v231
    %v1045 = vpop.f32.mrf.mxu0
    %v1046 = vadd.f32 %v661, %v1045
    %v1047 = vpop.f32.mrf.mxu0
    %1048 = vmatprep.mubr.f32.mxu0 %v236
    %1049 = vmatmul.mubr.f32.gmra.mxu0 %v235
    %v1050 = vpop.f32.mrf.mxu0
    %v1051 = vadd.f32 %v666, %v1050
    %v1052 = vpop.f32.mrf.mxu0
    %1053 = vmatprep.mubr.f32.mxu0 %v240
    %1054 = vmatmul.mubr.f32.gmra.mxu0 %v239
    %v1055 = vpop.f32.mrf.mxu0
    %v1056 = vadd.f32 %v671, %v1055
    %v1057 = vpop.f32.mrf.mxu0
    %1058 = vmatprep.mubr.f32.mxu0 %v244
    %1059 = vmatmul.mubr.f32.gmra.mxu0 %v243
    %v1060 = vpop.f32.mrf.mxu0
    %v1061 = vadd.f32 %v676, %v1060
    %v1062 = vpop.f32.mrf.mxu0
    %1063 = vmatprep.mubr.f32.mxu0 %v248
    %1064 = vmatmul.mubr.f32.gmra.mxu0 %v247
    %v1065 = vpop.f32.mrf.mxu0
    %v1066 = vadd.f32 %v681, %v1065
    %v1067 = vpop.f32.mrf.mxu0
    %1068 = vmatprep.mubr.f32.mxu0 %v252
    %1069 = vmatmul.mubr.f32.gmra.mxu0 %v251
    %v1070 = vpop.f32.mrf.mxu0
    %v1071 = vadd.f32 %v686, %v1070
    %v1072 = vpop.f32.mrf.mxu0
    %1073 = vmatprep.mubr.f32.mxu0 %v256
    %1074 = vmatmul.mubr.f32.gmra.mxu0 %v255
    %v1075 = vpop.f32.mrf.mxu0
    %v1076 = vadd.f32 %v691, %v1075
    %v1077 = vpop.f32.mrf.mxu0
    %1078 = vmatprep.mubr.f32.mxu0 %v260
    %1079 = vmatmul.mubr.f32.gmra.mxu0 %v259
    %v1080 = vpop.f32.mrf.mxu0
    %v1081 = vadd.f32 %v696, %v1080
    %v1082 = vpop.f32.mrf.mxu0
    %1083 = vmatprep.mubr.f32.mxu0 %v264
    %1084 = vmatmul.mubr.f32.gmra.mxu0 %v263
    %v1085 = vpop.f32.mrf.mxu0
    %v1086 = vadd.f32 %v701, %v1085
    %v1087 = vpop.f32.mrf.mxu0
    %1088 = vmatprep.mubr.f32.mxu0 %v268
    %1089 = vmatmul.mubr.f32.gmra.mxu0 %v267
    %v1090 = vpop.f32.mrf.mxu0
    %v1091 = vadd.f32 %v706, %v1090
    %v1092 = vpop.f32.mrf.mxu0
    %1093 = vmatprep.mubr.f32.mxu0 %v272
    %1094 = vmatmul.mubr.f32.gmra.mxu0 %v271
    %v1095 = vpop.f32.mrf.mxu0
    %v1096 = vadd.f32 %v711, %v1095
    %v1097 = vpop.f32.mrf.mxu0
    %1098 = vmatprep.mubr.f32.mxu0 %v276
    %1099 = vmatmul.mubr.f32.gmra.mxu0 %v275
    %v1100 = vpop.f32.mrf.mxu0
    %v1101 = vadd.f32 %v716, %v1100
    %v1102 = vpop.f32.mrf.mxu0
    %1103 = vmatprep.mubr.f32.mxu0 %v280
    %1104 = vmatmul.mubr.f32.gmra.mxu0 %v279
    %v1105 = vpop.f32.mrf.mxu0
    %v1106 = vadd.f32 %v721, %v1105
    %v1107 = vpop.f32.mrf.mxu0
    %1108 = vmatprep.mubr.f32.mxu0 %v284
    %1109 = vmatmul.mubr.f32.gmra.mxu0 %v283
    %v1110 = vpop.f32.mrf.mxu0
    %v1111 = vadd.f32 %v726, %v1110
    %v1112 = vpop.f32.mrf.mxu0
    %1113 = vmatprep.mubr.f32.mxu0 %v288
    %1114 = vmatmul.mubr.f32.gmra.mxu0 %v287
    %v1115 = vpop.f32.mrf.mxu0
    %v1116 = vadd.f32 %v731, %v1115
    %v1117 = vpop.f32.mrf.mxu0
    %1118 = vmatprep.mubr.f32.mxu0 %v292
    %1119 = vmatmul.mubr.f32.gmra.mxu0 %v291
    %v1120 = vpop.f32.mrf.mxu0
    %v1121 = vadd.f32 %v736, %v1120
    %v1122 = vpop.f32.mrf.mxu0
    %1123 = vmatprep.mubr.f32.mxu0 %v296
    %1124 = vmatmul.mubr.f32.gmra.mxu0 %v295
    %v1125 = vpop.f32.mrf.mxu0
    %v1126 = vadd.f32 %v741, %v1125
    %v1127 = vpop.f32.mrf.mxu0
    %1128 = vmatprep.mubr.f32.mxu0 %v300
    %1129 = vmatmul.mubr.f32.gmra.mxu0 %v299
    %v1130 = vpop.f32.mrf.mxu0
    %v1131 = vadd.f32 %v746, %v1130
    %v1132 = vpop.f32.mrf.mxu0
    %1133 = vmatprep.mubr.f32.mxu0 %v304
    %1134 = vmatmul.mubr.f32.gmra.mxu0 %v303
    %v1135 = vpop.f32.mrf.mxu0
    %v1136 = vadd.f32 %v751, %v1135
    %v1137 = vpop.f32.mrf.mxu0
    %1138 = vdwg.mxu0
    %v1139 = vadd.f32 %v821, %v826
    %v1140 = vadd.f32 %v1139, %v831
    %v1141 = vadd.f32 %v1140, %v836
    %v1142 = vadd.f32 %v1141, %v841
    %v1143 = vadd.f32 %v1142, %v846
    %v1144 = vadd.f32 %v1143, %v851
    %v1145 = vadd.f32 %v1144, %v856
    %v1146 = vadd.f32 %v1145, %v861
    %v1147 = vadd.f32 %v1146, %v866
    %v1148 = vadd.f32 %v1147, %v871
    %v1149 = vadd.f32 %v1148, %v876
    %v1150 = vadd.f32 %v1149, %v881
    %v1151 = vadd.f32 %v1150, %v886
    %v1152 = vadd.f32 %v1151, %v891
    %v1153 = vadd.f32 %v1152, %v896
    %v1154 = vadd.f32 %v1153, %v901
    %v1155 = vadd.f32 %v1154, %v906
    %v1156 = vadd.f32 %v1155, %v911
    %v1157 = vadd.f32 %v1156, %v916
    %v1158 = vadd.f32 %v1157, %v921
    %v1159 = vadd.f32 %v1158, %v926
    %v1160 = vadd.f32 %v1159, %v931
    %v1161 = vadd.f32 %v1160, %v936
    %v1162 = vadd.f32 %v1161, %v941
    %v1163 = vadd.f32 %v1162, %v946
    %v1164 = vadd.f32 %v1163, %v951
    %v1165 = vadd.f32 %v1164, %v956
    %v1166 = vadd.f32 %v1165, %v961
    %v1167 = vadd.f32 %v1166, %v966
    %v1168 = vadd.f32 %v1167, %v971
    %v1169 = vadd.f32 %v1168, %v976
    %v1170 = vadd.f32 %v1169, %v981
    %v1171 = vadd.f32 %v1170, %v986
    %v1172 = vadd.f32 %v1171, %v991
    %v1173 = vadd.f32 %v1172, %v996
    %v1174 = vadd.f32 %v1173, %v1001
    %v1175 = vadd.f32 %v1174, %v1006
    %v1176 = vadd.f32 %v1175, %v1011
    %v1177 = vadd.f32 %v1176, %v1016
    %v1178 = vadd.f32 %v1177, %v1021
    %v1179 = vadd.f32 %v1178, %v1026
    %v1180 = vadd.f32 %v1179, %v1031
    %v1181 = vadd.f32 %v1180, %v1036
    %v1182 = vadd.f32 %v1181, %v1041
    %v1183 = vadd.f32 %v1182, %v1046
    %v1184 = vadd.f32 %v1183, %v1051
    %v1185 = vadd.f32 %v1184, %v1056
    %v1186 = vadd.f32 %v1185, %v1061
    %v1187 = vadd.f32 %v1186, %v1066
    %v1188 = vadd.f32 %v1187, %v1071
    %v1189 = vadd.f32 %v1188, %v1076
    %v1190 = vadd.f32 %v1189, %v1081
    %v1191 = vadd.f32 %v1190, %v1086
    %v1192 = vadd.f32 %v1191, %v1091
    %v1193 = vadd.f32 %v1192, %v1096
    %v1194 = vadd.f32 %v1193, %v1101
    %v1195 = vadd.f32 %v1194, %v1106
    %v1196 = vadd.f32 %v1195, %v1111
    %v1197 = vadd.f32 %v1196, %v1116
    %v1198 = vadd.f32 %v1197, %v1121
    %v1199 = vadd.f32 %v1198, %v1126
    %v1200 = vadd.f32 %v1199, %v1131
    %v1201 = vadd.f32 %v1200, %v1136
    %v1202 = vrot.slane %v1201, 4
    %v1203 = vadd.f32 %v1201, %v1202
    %v1204 = vrot.slane %v1203, 2
    %v1205 = vadd.f32 %v1203, %v1204
    %v1206 = vrot.slane %v1205, 1
    %v1207 = vadd.f32 %v1205, %v1206
    %v1208 = vmul.f32 %v1207, 0.0026041667
    %v1209 = vmul.f32 %v821, %v821
    %v1210 = vmul.f32 %v826, %v826
    %v1211 = vmul.f32 %v831, %v831
    %v1212 = vmul.f32 %v836, %v836
    %v1213 = vmul.f32 %v841, %v841
    %v1214 = vmul.f32 %v846, %v846
    %v1215 = vmul.f32 %v851, %v851
    %v1216 = vmul.f32 %v856, %v856
    %v1217 = vmul.f32 %v861, %v861
    %v1218 = vmul.f32 %v866, %v866
    %v1219 = vmul.f32 %v871, %v871
    %v1220 = vmul.f32 %v876, %v876
    %v1221 = vmul.f32 %v881, %v881
    %v1222 = vmul.f32 %v886, %v886
    %v1223 = vmul.f32 %v891, %v891
    %v1224 = vmul.f32 %v896, %v896
    %v1225 = vmul.f32 %v901, %v901
    %v1226 = vmul.f32 %v906, %v906
    %v1227 = vmul.f32 %v911, %v911
    %v1228 = vmul.f32 %v916, %v916
    %v1229 = vmul.f32 %v921, %v921
    %v1230 = vmul.f32 %v926, %v926
    %v1231 = vmul.f32 %v931, %v931
    %v1232 = vmul.f32 %v936, %v936
    %v1233 = vmul.f32 %v941, %v941
    %v1234 = vmul.f32 %v946, %v946
    %v1235 = vmul.f32 %v951, %v951
    %v1236 = vmul.f32 %v956, %v956
    %v1237 = vmul.f32 %v961, %v961
    %v1238 = vmul.f32 %v966, %v966
    %v1239 = vmul.f32 %v971, %v971
    %v1240 = vmul.f32 %v976, %v976
    %v1241 = vmul.f32 %v981, %v981
    %v1242 = vmul.f32 %v986, %v986
    %v1243 = vmul.f32 %v991, %v991
    %v1244 = vmul.f32 %v996, %v996
    %v1245 = vmul.f32 %v1001, %v1001
    %v1246 = vmul.f32 %v1006, %v1006
    %v1247 = vmul.f32 %v1011, %v1011
    %v1248 = vmul.f32 %v1016, %v1016
    %v1249 = vmul.f32 %v1021, %v1021
    %v1250 = vmul.f32 %v1026, %v1026
    %v1251 = vmul.f32 %v1031, %v1031
    %v1252 = vmul.f32 %v1036, %v1036
    %v1253 = vmul.f32 %v1041, %v1041
    %v1254 = vmul.f32 %v1046, %v1046
    %v1255 = vmul.f32 %v1051, %v1051
    %v1256 = vmul.f32 %v1056, %v1056
    %v1257 = vmul.f32 %v1061, %v1061
    %v1258 = vmul.f32 %v1066, %v1066
    %v1259 = vmul.f32 %v1071, %v1071
    %v1260 = vmul.f32 %v1076, %v1076
    %v1261 = vmul.f32 %v1081, %v1081
    %v1262 = vmul.f32 %v1086, %v1086
    %v1263 = vmul.f32 %v1091, %v1091
    %v1264 = vmul.f32 %v1096, %v1096
    %v1265 = vmul.f32 %v1101, %v1101
    %v1266 = vmul.f32 %v1106, %v1106
    %v1267 = vmul.f32 %v1111, %v1111
    %v1268 = vmul.f32 %v1116, %v1116
    %v1269 = vmul.f32 %v1121, %v1121
    %v1270 = vmul.f32 %v1126, %v1126
    %v1271 = vmul.f32 %v1131, %v1131
    %v1272 = vmul.f32 %v1136, %v1136
    %v1273 = vadd.f32 %v1209, %v1210
    %v1274 = vadd.f32 %v1273, %v1211
    %v1275 = vadd.f32 %v1274, %v1212
    %v1276 = vadd.f32 %v1275, %v1213
    %v1277 = vadd.f32 %v1276, %v1214
    %v1278 = vadd.f32 %v1277, %v1215
    %v1279 = vadd.f32 %v1278, %v1216
    %v1280 = vadd.f32 %v1279, %v1217
    %v1281 = vadd.f32 %v1280, %v1218
    %v1282 = vadd.f32 %v1281, %v1219
    %v1283 = vadd.f32 %v1282, %v1220
    %v1284 = vadd.f32 %v1283, %v1221
    %v1285 = vadd.f32 %v1284, %v1222
    %v1286 = vadd.f32 %v1285, %v1223
    %v1287 = vadd.f32 %v1286, %v1224
    %v1288 = vadd.f32 %v1287, %v1225
    %v1289 = vadd.f32 %v1288, %v1226
    %v1290 = vadd.f32 %v1289, %v1227
    %v1291 = vadd.f32 %v1290, %v1228
    %v1292 = vadd.f32 %v1291, %v1229
    %v1293 = vadd.f32 %v1292, %v1230
    %v1294 = vadd.f32 %v1293, %v1231
    %v1295 = vadd.f32 %v1294, %v1232
    %v1296 = vadd.f32 %v1295, %v1233
    %v1297 = vadd.f32 %v1296, %v1234
    %v1298 = vadd.f32 %v1297, %v1235
    %v1299 = vadd.f32 %v1298, %v1236
    %v1300 = vadd.f32 %v1299, %v1237
    %v1301 = vadd.f32 %v1300, %v1238
    %v1302 = vadd.f32 %v1301, %v1239
    %v1303 = vadd.f32 %v1302, %v1240
    %v1304 = vadd.f32 %v1303, %v1241
    %v1305 = vadd.f32 %v1304, %v1242
    %v1306 = vadd.f32 %v1305, %v1243
    %v1307 = vadd.f32 %v1306, %v1244
    %v1308 = vadd.f32 %v1307, %v1245
    %v1309 = vadd.f32 %v1308, %v1246
    %v1310 = vadd.f32 %v1309, %v1247
    %v1311 = vadd.f32 %v1310, %v1248
    %v1312 = vadd.f32 %v1311, %v1249
    %v1313 = vadd.f32 %v1312, %v1250
    %v1314 = vadd.f32 %v1313, %v1251
    %v1315 = vadd.f32 %v1314, %v1252
    %v1316 = vadd.f32 %v1315, %v1253
    %v1317 = vadd.f32 %v1316, %v1254
    %v1318 = vadd.f32 %v1317, %v1255
    %v1319 = vadd.f32 %v1318, %v1256
    %v1320 = vadd.f32 %v1319, %v1257
    %v1321 = vadd.f32 %v1320, %v1258
    %v1322 = vadd.f32 %v1321, %v1259
    %v1323 = vadd.f32 %v1322, %v1260
    %v1324 = vadd.f32 %v1323, %v1261
    %v1325 = vadd.f32 %v1324, %v1262
    %v1326 = vadd.f32 %v1325, %v1263
    %v1327 = vadd.f32 %v1326, %v1264
    %v1328 = vadd.f32 %v1327, %v1265
    %v1329 = vadd.f32 %v1328, %v1266
    %v1330 = vadd.f32 %v1329, %v1267
    %v1331 = vadd.f32 %v1330, %v1268
    %v1332 = vadd.f32 %v1331, %v1269
    %v1333 = vadd.f32 %v1332, %v1270
    %v1334 = vadd.f32 %v1333, %v1271
    %v1335 = vadd.f32 %v1334, %v1272
    %v1336 = vrot.slane %v1335, 4
    %v1337 = vadd.f32 %v1335, %v1336
    %v1338 = vrot.slane %v1337, 2
    %v1339 = vadd.f32 %v1337, %v1338
    %v1340 = vrot.slane %v1339, 1
    %v1341 = vadd.f32 %v1339, %v1340
    %v1342 = vmul.f32 %v1341, 0.0026041667
    %v1343 = vmul.f32 %v1208, %v1208
    %v1344 = vsub.f32 %v1342, %v1343
    %v1345 = vmax.f32 %v1344, 0.0
    %v1346 = vadd.f32 %v1345, 1e-05
    %v1347 = vrsqrt.pop %v1346
    %v1348 = vld [vmem:[%s2] sm:$0x1]
    %v1349 = vmul.f32 %v1348, %v1347
    %v1350 = vld [vmem:[%s3] sm:$0x1]
    %v1351 = vmul.f32 %v1208, %v1349
    %v1352 = vsub.f32 %v1350, %v1351
    %v1354 = vlaneseq
    %v1355 = vshrl.u32 %v1354, 7
    %v1356 = vsub.s32 0, %v1355
    %v1357 = vrot.slane %v1349, %v1356
    %v1359 = vmul.f32 %v821, %v1357
    %v1360 = vmul.f32 %v826, %v1357
    %v1361 = vmul.f32 %v831, %v1357
    %v1362 = vmul.f32 %v836, %v1357
    %v1363 = vmul.f32 %v841, %v1357
    %v1364 = vmul.f32 %v846, %v1357
    %v1365 = vmul.f32 %v851, %v1357
    %v1366 = vmul.f32 %v856, %v1357
    %v1367 = vmul.f32 %v861, %v1357
    %v1368 = vmul.f32 %v866, %v1357
    %v1369 = vmul.f32 %v871, %v1357
    %v1370 = vmul.f32 %v876, %v1357
    %v1371 = vmul.f32 %v881, %v1357
    %v1372 = vmul.f32 %v886, %v1357
    %v1373 = vmul.f32 %v891, %v1357
    %v1374 = vmul.f32 %v896, %v1357
    %v1375 = vmul.f32 %v901, %v1357
    %v1376 = vmul.f32 %v906, %v1357
    %v1377 = vmul.f32 %v911, %v1357
    %v1378 = vmul.f32 %v916, %v1357
    %v1379 = vmul.f32 %v921, %v1357
    %v1380 = vmul.f32 %v926, %v1357
    %v1381 = vmul.f32 %v931, %v1357
    %v1382 = vmul.f32 %v936, %v1357
    %v1383 = vmul.f32 %v941, %v1357
    %v1384 = vmul.f32 %v946, %v1357
    %v1385 = vmul.f32 %v951, %v1357
    %v1386 = vmul.f32 %v956, %v1357
    %v1387 = vmul.f32 %v961, %v1357
    %v1388 = vmul.f32 %v966, %v1357
    %v1389 = vmul.f32 %v971, %v1357
    %v1390 = vmul.f32 %v976, %v1357
    %v1391 = vmul.f32 %v981, %v1357
    %v1392 = vmul.f32 %v986, %v1357
    %v1393 = vmul.f32 %v991, %v1357
    %v1394 = vmul.f32 %v996, %v1357
    %v1395 = vmul.f32 %v1001, %v1357
    %v1396 = vmul.f32 %v1006, %v1357
    %v1397 = vmul.f32 %v1011, %v1357
    %v1398 = vmul.f32 %v1016, %v1357
    %v1399 = vmul.f32 %v1021, %v1357
    %v1400 = vmul.f32 %v1026, %v1357
    %v1401 = vmul.f32 %v1031, %v1357
    %v1402 = vmul.f32 %v1036, %v1357
    %v1403 = vmul.f32 %v1041, %v1357
    %v1404 = vmul.f32 %v1046, %v1357
    %v1405 = vmul.f32 %v1051, %v1357
    %v1406 = vmul.f32 %v1056, %v1357
    %v1407 = vmul.f32 %v1061, %v1357
    %v1408 = vmul.f32 %v1066, %v1357
    %v1409 = vmul.f32 %v1071, %v1357
    %v1410 = vmul.f32 %v1076, %v1357
    %v1411 = vmul.f32 %v1081, %v1357
    %v1412 = vmul.f32 %v1086, %v1357
    %v1413 = vmul.f32 %v1091, %v1357
    %v1414 = vmul.f32 %v1096, %v1357
    %v1415 = vmul.f32 %v1101, %v1357
    %v1416 = vmul.f32 %v1106, %v1357
    %v1417 = vmul.f32 %v1111, %v1357
    %v1418 = vmul.f32 %v1116, %v1357
    %v1419 = vmul.f32 %v1121, %v1357
    %v1420 = vmul.f32 %v1126, %v1357
    %v1421 = vmul.f32 %v1131, %v1357
    %v1422 = vmul.f32 %v1136, %v1357
    %v1424 = vlaneseq
    %v1425 = vshrl.u32 %v1424, 7
    %v1426 = vsub.s32 0, %v1425
    %v1427 = vrot.slane %v1352, %v1426
    %v1429 = vadd.f32 %v1359, %v1427
    %v1430 = vadd.f32 %v1360, %v1427
    %v1431 = vadd.f32 %v1361, %v1427
    %v1432 = vadd.f32 %v1362, %v1427
    %v1433 = vadd.f32 %v1363, %v1427
    %v1434 = vadd.f32 %v1364, %v1427
    %v1435 = vadd.f32 %v1365, %v1427
    %v1436 = vadd.f32 %v1366, %v1427
    %v1437 = vadd.f32 %v1367, %v1427
    %v1438 = vadd.f32 %v1368, %v1427
    %v1439 = vadd.f32 %v1369, %v1427
    %v1440 = vadd.f32 %v1370, %v1427
    %v1441 = vadd.f32 %v1371, %v1427
    %v1442 = vadd.f32 %v1372, %v1427
    %v1443 = vadd.f32 %v1373, %v1427
    %v1444 = vadd.f32 %v1374, %v1427
    %v1445 = vadd.f32 %v1375, %v1427
    %v1446 = vadd.f32 %v1376, %v1427
    %v1447 = vadd.f32 %v1377, %v1427
    %v1448 = vadd.f32 %v1378, %v1427
    %v1449 = vadd.f32 %v1379, %v1427
    %v1450 = vadd.f32 %v1380, %v1427
    %v1451 = vadd.f32 %v1381, %v1427
    %v1452 = vadd.f32 %v1382, %v1427
    %v1453 = vadd.f32 %v1383, %v1427
    %v1454 = vadd.f32 %v1384, %v1427
    %v1455 = vadd.f32 %v1385, %v1427
    %v1456 = vadd.f32 %v1386, %v1427
    %v1457 = vadd.f32 %v1387, %v1427
    %v1458 = vadd.f32 %v1388, %v1427
    %v1459 = vadd.f32 %v1389, %v1427
    %v1460 = vadd.f32 %v1390, %v1427
    %v1461 = vadd.f32 %v1391, %v1427
    %v1462 = vadd.f32 %v1392, %v1427
    %v1463 = vadd.f32 %v1393, %v1427
    %v1464 = vadd.f32 %v1394, %v1427
    %v1465 = vadd.f32 %v1395, %v1427
    %v1466 = vadd.f32 %v1396, %v1427
    %v1467 = vadd.f32 %v1397, %v1427
    %v1468 = vadd.f32 %v1398, %v1427
    %v1469 = vadd.f32 %v1399, %v1427
    %v1470 = vadd.f32 %v1400, %v1427
    %v1471 = vadd.f32 %v1401, %v1427
    %v1472 = vadd.f32 %v1402, %v1427
    %v1473 = vadd.f32 %v1403, %v1427
    %v1474 = vadd.f32 %v1404, %v1427
    %v1475 = vadd.f32 %v1405, %v1427
    %v1476 = vadd.f32 %v1406, %v1427
    %v1477 = vadd.f32 %v1407, %v1427
    %v1478 = vadd.f32 %v1408, %v1427
    %v1479 = vadd.f32 %v1409, %v1427
    %v1480 = vadd.f32 %v1410, %v1427
    %v1481 = vadd.f32 %v1411, %v1427
    %v1482 = vadd.f32 %v1412, %v1427
    %v1483 = vadd.f32 %v1413, %v1427
    %v1484 = vadd.f32 %v1414, %v1427
    %v1485 = vadd.f32 %v1415, %v1427
    %v1486 = vadd.f32 %v1416, %v1427
    %v1487 = vadd.f32 %v1417, %v1427
    %v1488 = vadd.f32 %v1418, %v1427
    %v1489 = vadd.f32 %v1419, %v1427
    %v1490 = vadd.f32 %v1420, %v1427
    %v1491 = vadd.f32 %v1421, %v1427
    %v1492 = vadd.f32 %v1422, %v1427
    %v1493 = vsub.f32 0.0, %v1429
    %v1494 = vsub.f32 0.0, %v1430
    %v1495 = vsub.f32 0.0, %v1431
    %v1496 = vsub.f32 0.0, %v1432
    %v1497 = vsub.f32 0.0, %v1433
    %v1498 = vsub.f32 0.0, %v1434
    %v1499 = vsub.f32 0.0, %v1435
    %v1500 = vsub.f32 0.0, %v1436
    %v1501 = vsub.f32 0.0, %v1437
    %v1502 = vsub.f32 0.0, %v1438
    %v1503 = vsub.f32 0.0, %v1439
    %v1504 = vsub.f32 0.0, %v1440
    %v1505 = vsub.f32 0.0, %v1441
    %v1506 = vsub.f32 0.0, %v1442
    %v1507 = vsub.f32 0.0, %v1443
    %v1508 = vsub.f32 0.0, %v1444
    %v1509 = vsub.f32 0.0, %v1445
    %v1510 = vsub.f32 0.0, %v1446
    %v1511 = vsub.f32 0.0, %v1447
    %v1512 = vsub.f32 0.0, %v1448
    %v1513 = vsub.f32 0.0, %v1449
    %v1514 = vsub.f32 0.0, %v1450
    %v1515 = vsub.f32 0.0, %v1451
    %v1516 = vsub.f32 0.0, %v1452
    %v1517 = vsub.f32 0.0, %v1453
    %v1518 = vsub.f32 0.0, %v1454
    %v1519 = vsub.f32 0.0, %v1455
    %v1520 = vsub.f32 0.0, %v1456
    %v1521 = vsub.f32 0.0, %v1457
    %v1522 = vsub.f32 0.0, %v1458
    %v1523 = vsub.f32 0.0, %v1459
    %v1524 = vsub.f32 0.0, %v1460
    %v1525 = vsub.f32 0.0, %v1461
    %v1526 = vsub.f32 0.0, %v1462
    %v1527 = vsub.f32 0.0, %v1463
    %v1528 = vsub.f32 0.0, %v1464
    %v1529 = vsub.f32 0.0, %v1465
    %v1530 = vsub.f32 0.0, %v1466
    %v1531 = vsub.f32 0.0, %v1467
    %v1532 = vsub.f32 0.0, %v1468
    %v1533 = vsub.f32 0.0, %v1469
    %v1534 = vsub.f32 0.0, %v1470
    %v1535 = vsub.f32 0.0, %v1471
    %v1536 = vsub.f32 0.0, %v1472
    %v1537 = vsub.f32 0.0, %v1473
    %v1538 = vsub.f32 0.0, %v1474
    %v1539 = vsub.f32 0.0, %v1475
    %v1540 = vsub.f32 0.0, %v1476
    %v1541 = vsub.f32 0.0, %v1477
    %v1542 = vsub.f32 0.0, %v1478
    %v1543 = vsub.f32 0.0, %v1479
    %v1544 = vsub.f32 0.0, %v1480
    %v1545 = vsub.f32 0.0, %v1481
    %v1546 = vsub.f32 0.0, %v1482
    %v1547 = vsub.f32 0.0, %v1483
    %v1548 = vsub.f32 0.0, %v1484
    %v1549 = vsub.f32 0.0, %v1485
    %v1550 = vsub.f32 0.0, %v1486
    %v1551 = vsub.f32 0.0, %v1487
    %v1552 = vsub.f32 0.0, %v1488
    %v1553 = vsub.f32 0.0, %v1489
    %v1554 = vsub.f32 0.0, %v1490
    %v1555 = vsub.f32 0.0, %v1491
    %v1556 = vsub.f32 0.0, %v1492
    %v1557 = vmul.f32 %v1493, 1.442695
    %v1558 = vpow.pop %v1557
    %v1559 = vmul.f32 %v1494, 1.442695
    %v1560 = vpow.pop %v1559
    %v1561 = vmul.f32 %v1495, 1.442695
    %v1562 = vpow.pop %v1561
    %v1563 = vmul.f32 %v1496, 1.442695
    %v1564 = vpow.pop %v1563
    %v1565 = vmul.f32 %v1497, 1.442695
    %v1566 = vpow.pop %v1565
    %v1567 = vmul.f32 %v1498, 1.442695
    %v1568 = vpow.pop %v1567
    %v1569 = vmul.f32 %v1499, 1.442695
    %v1570 = vpow.pop %v1569
    %v1571 = vmul.f32 %v1500, 1.442695
    %v1572 = vpow.pop %v1571
    %v1573 = vmul.f32 %v1501, 1.442695
    %v1574 = vpow.pop %v1573
    %v1575 = vmul.f32 %v1502, 1.442695
    %v1576 = vpow.pop %v1575
    %v1577 = vmul.f32 %v1503, 1.442695
    %v1578 = vpow.pop %v1577
    %v1579 = vmul.f32 %v1504, 1.442695
    %v1580 = vpow.pop %v1579
    %v1581 = vmul.f32 %v1505, 1.442695
    %v1582 = vpow.pop %v1581
    %v1583 = vmul.f32 %v1506, 1.442695
    %v1584 = vpow.pop %v1583
    %v1585 = vmul.f32 %v1507, 1.442695
    %v1586 = vpow.pop %v1585
    %v1587 = vmul.f32 %v1508, 1.442695
    %v1588 = vpow.pop %v1587
    %v1589 = vmul.f32 %v1509, 1.442695
    %v1590 = vpow.pop %v1589
    %v1591 = vmul.f32 %v1510, 1.442695
    %v1592 = vpow.pop %v1591
    %v1593 = vmul.f32 %v1511, 1.442695
    %v1594 = vpow.pop %v1593
    %v1595 = vmul.f32 %v1512, 1.442695
    %v1596 = vpow.pop %v1595
    %v1597 = vmul.f32 %v1513, 1.442695
    %v1598 = vpow.pop %v1597
    %v1599 = vmul.f32 %v1514, 1.442695
    %v1600 = vpow.pop %v1599
    %v1601 = vmul.f32 %v1515, 1.442695
    %v1602 = vpow.pop %v1601
    %v1603 = vmul.f32 %v1516, 1.442695
    %v1604 = vpow.pop %v1603
    %v1605 = vmul.f32 %v1517, 1.442695
    %v1606 = vpow.pop %v1605
    %v1607 = vmul.f32 %v1518, 1.442695
    %v1608 = vpow.pop %v1607
    %v1609 = vmul.f32 %v1519, 1.442695
    %v1610 = vpow.pop %v1609
    %v1611 = vmul.f32 %v1520, 1.442695
    %v1612 = vpow.pop %v1611
    %v1613 = vmul.f32 %v1521, 1.442695
    %v1614 = vpow.pop %v1613
    %v1615 = vmul.f32 %v1522, 1.442695
    %v1616 = vpow.pop %v1615
    %v1617 = vmul.f32 %v1523, 1.442695
    %v1618 = vpow.pop %v1617
    %v1619 = vmul.f32 %v1524, 1.442695
    %v1620 = vpow.pop %v1619
    %v1621 = vmul.f32 %v1525, 1.442695
    %v1622 = vpow.pop %v1621
    %v1623 = vmul.f32 %v1526, 1.442695
    %v1624 = vpow.pop %v1623
    %v1625 = vmul.f32 %v1527, 1.442695
    %v1626 = vpow.pop %v1625
    %v1627 = vmul.f32 %v1528, 1.442695
    %v1628 = vpow.pop %v1627
    %v1629 = vmul.f32 %v1529, 1.442695
    %v1630 = vpow.pop %v1629
    %v1631 = vmul.f32 %v1530, 1.442695
    %v1632 = vpow.pop %v1631
    %v1633 = vmul.f32 %v1531, 1.442695
    %v1634 = vpow.pop %v1633
    %v1635 = vmul.f32 %v1532, 1.442695
    %v1636 = vpow.pop %v1635
    %v1637 = vmul.f32 %v1533, 1.442695
    %v1638 = vpow.pop %v1637
    %v1639 = vmul.f32 %v1534, 1.442695
    %v1640 = vpow.pop %v1639
    %v1641 = vmul.f32 %v1535, 1.442695
    %v1642 = vpow.pop %v1641
    %v1643 = vmul.f32 %v1536, 1.442695
    %v1644 = vpow.pop %v1643
    %v1645 = vmul.f32 %v1537, 1.442695
    %v1646 = vpow.pop %v1645
    %v1647 = vmul.f32 %v1538, 1.442695
    %v1648 = vpow.pop %v1647
    %v1649 = vmul.f32 %v1539, 1.442695
    %v1650 = vpow.pop %v1649
    %v1651 = vmul.f32 %v1540, 1.442695
    %v1652 = vpow.pop %v1651
    %v1653 = vmul.f32 %v1541, 1.442695
    %v1654 = vpow.pop %v1653
    %v1655 = vmul.f32 %v1542, 1.442695
    %v1656 = vpow.pop %v1655
    %v1657 = vmul.f32 %v1543, 1.442695
    %v1658 = vpow.pop %v1657
    %v1659 = vmul.f32 %v1544, 1.442695
    %v1660 = vpow.pop %v1659
    %v1661 = vmul.f32 %v1545, 1.442695
    %v1662 = vpow.pop %v1661
    %v1663 = vmul.f32 %v1546, 1.442695
    %v1664 = vpow.pop %v1663
    %v1665 = vmul.f32 %v1547, 1.442695
    %v1666 = vpow.pop %v1665
    %v1667 = vmul.f32 %v1548, 1.442695
    %v1668 = vpow.pop %v1667
    %v1669 = vmul.f32 %v1549, 1.442695
    %v1670 = vpow.pop %v1669
    %v1671 = vmul.f32 %v1550, 1.442695
    %v1672 = vpow.pop %v1671
    %v1673 = vmul.f32 %v1551, 1.442695
    %v1674 = vpow.pop %v1673
    %v1675 = vmul.f32 %v1552, 1.442695
    %v1676 = vpow.pop %v1675
    %v1677 = vmul.f32 %v1553, 1.442695
    %v1678 = vpow.pop %v1677
    %v1679 = vmul.f32 %v1554, 1.442695
    %v1680 = vpow.pop %v1679
    %v1681 = vmul.f32 %v1555, 1.442695
    %v1682 = vpow.pop %v1681
    %v1683 = vmul.f32 %v1556, 1.442695
    %v1684 = vpow.pop %v1683
    %v1685 = vadd.f32 %v1558, 1.0
    %v1686 = vadd.f32 %v1560, 1.0
    %v1687 = vadd.f32 %v1562, 1.0
    %v1688 = vadd.f32 %v1564, 1.0
    %v1689 = vadd.f32 %v1566, 1.0
    %v1690 = vadd.f32 %v1568, 1.0
    %v1691 = vadd.f32 %v1570, 1.0
    %v1692 = vadd.f32 %v1572, 1.0
    %v1693 = vadd.f32 %v1574, 1.0
    %v1694 = vadd.f32 %v1576, 1.0
    %v1695 = vadd.f32 %v1578, 1.0
    %v1696 = vadd.f32 %v1580, 1.0
    %v1697 = vadd.f32 %v1582, 1.0
    %v1698 = vadd.f32 %v1584, 1.0
    %v1699 = vadd.f32 %v1586, 1.0
    %v1700 = vadd.f32 %v1588, 1.0
    %v1701 = vadd.f32 %v1590, 1.0
    %v1702 = vadd.f32 %v1592, 1.0
    %v1703 = vadd.f32 %v1594, 1.0
    %v1704 = vadd.f32 %v1596, 1.0
    %v1705 = vadd.f32 %v1598, 1.0
    %v1706 = vadd.f32 %v1600, 1.0
    %v1707 = vadd.f32 %v1602, 1.0
    %v1708 = vadd.f32 %v1604, 1.0
    %v1709 = vadd.f32 %v1606, 1.0
    %v1710 = vadd.f32 %v1608, 1.0
    %v1711 = vadd.f32 %v1610, 1.0
    %v1712 = vadd.f32 %v1612, 1.0
    %v1713 = vadd.f32 %v1614, 1.0
    %v1714 = vadd.f32 %v1616, 1.0
    %v1715 = vadd.f32 %v1618, 1.0
    %v1716 = vadd.f32 %v1620, 1.0
    %v1717 = vadd.f32 %v1622, 1.0
    %v1718 = vadd.f32 %v1624, 1.0
    %v1719 = vadd.f32 %v1626, 1.0
    %v1720 = vadd.f32 %v1628, 1.0
    %v1721 = vadd.f32 %v1630, 1.0
    %v1722 = vadd.f32 %v1632, 1.0
    %v1723 = vadd.f32 %v1634, 1.0
    %v1724 = vadd.f32 %v1636, 1.0
    %v1725 = vadd.f32 %v1638, 1.0
    %v1726 = vadd.f32 %v1640, 1.0
    %v1727 = vadd.f32 %v1642, 1.0
    %v1728 = vadd.f32 %v1644, 1.0
    %v1729 = vadd.f32 %v1646, 1.0
    %v1730 = vadd.f32 %v1648, 1.0
    %v1731 = vadd.f32 %v1650, 1.0
    %v1732 = vadd.f32 %v1652, 1.0
    %v1733 = vadd.f32 %v1654, 1.0
    %v1734 = vadd.f32 %v1656, 1.0
    %v1735 = vadd.f32 %v1658, 1.0
    %v1736 = vadd.f32 %v1660, 1.0
    %v1737 = vadd.f32 %v1662, 1.0
    %v1738 = vadd.f32 %v1664, 1.0
    %v1739 = vadd.f32 %v1666, 1.0
    %v1740 = vadd.f32 %v1668, 1.0
    %v1741 = vadd.f32 %v1670, 1.0
    %v1742 = vadd.f32 %v1672, 1.0
    %v1743 = vadd.f32 %v1674, 1.0
    %v1744 = vadd.f32 %v1676, 1.0
    %v1745 = vadd.f32 %v1678, 1.0
    %v1746 = vadd.f32 %v1680, 1.0
    %v1747 = vadd.f32 %v1682, 1.0
    %v1748 = vadd.f32 %v1684, 1.0
    %v1749 = vrcp.pop %v1685
    %v1750 = vmul.f32 1.0, %v1749
    %v1751 = vrcp.pop %v1686
    %v1752 = vmul.f32 1.0, %v1751
    %v1753 = vrcp.pop %v1687
    %v1754 = vmul.f32 1.0, %v1753
    %v1755 = vrcp.pop %v1688
    %v1756 = vmul.f32 1.0, %v1755
    %v1757 = vrcp.pop %v1689
    %v1758 = vmul.f32 1.0, %v1757
    %v1759 = vrcp.pop %v1690
    %v1760 = vmul.f32 1.0, %v1759
    %v1761 = vrcp.pop %v1691
    %v1762 = vmul.f32 1.0, %v1761
    %v1763 = vrcp.pop %v1692
    %v1764 = vmul.f32 1.0, %v1763
    %v1765 = vrcp.pop %v1693
    %v1766 = vmul.f32 1.0, %v1765
    %v1767 = vrcp.pop %v1694
    %v1768 = vmul.f32 1.0, %v1767
    %v1769 = vrcp.pop %v1695
    %v1770 = vmul.f32 1.0, %v1769
    %v1771 = vrcp.pop %v1696
    %v1772 = vmul.f32 1.0, %v1771
    %v1773 = vrcp.pop %v1697
    %v1774 = vmul.f32 1.0, %v1773
    %v1775 = vrcp.pop %v1698
    %v1776 = vmul.f32 1.0, %v1775
    %v1777 = vrcp.pop %v1699
    %v1778 = vmul.f32 1.0, %v1777
    %v1779 = vrcp.pop %v1700
    %v1780 = vmul.f32 1.0, %v1779
    %v1781 = vrcp.pop %v1701
    %v1782 = vmul.f32 1.0, %v1781
    %v1783 = vrcp.pop %v1702
    %v1784 = vmul.f32 1.0, %v1783
    %v1785 = vrcp.pop %v1703
    %v1786 = vmul.f32 1.0, %v1785
    %v1787 = vrcp.pop %v1704
    %v1788 = vmul.f32 1.0, %v1787
    %v1789 = vrcp.pop %v1705
    %v1790 = vmul.f32 1.0, %v1789
    %v1791 = vrcp.pop %v1706
    %v1792 = vmul.f32 1.0, %v1791
    %v1793 = vrcp.pop %v1707
    %v1794 = vmul.f32 1.0, %v1793
    %v1795 = vrcp.pop %v1708
    %v1796 = vmul.f32 1.0, %v1795
    %v1797 = vrcp.pop %v1709
    %v1798 = vmul.f32 1.0, %v1797
    %v1799 = vrcp.pop %v1710
    %v1800 = vmul.f32 1.0, %v1799
    %v1801 = vrcp.pop %v1711
    %v1802 = vmul.f32 1.0, %v1801
    %v1803 = vrcp.pop %v1712
    %v1804 = vmul.f32 1.0, %v1803
    %v1805 = vrcp.pop %v1713
    %v1806 = vmul.f32 1.0, %v1805
    %v1807 = vrcp.pop %v1714
    %v1808 = vmul.f32 1.0, %v1807
    %v1809 = vrcp.pop %v1715
    %v1810 = vmul.f32 1.0, %v1809
    %v1811 = vrcp.pop %v1716
    %v1812 = vmul.f32 1.0, %v1811
    %v1813 = vrcp.pop %v1717
    %v1814 = vmul.f32 1.0, %v1813
    %v1815 = vrcp.pop %v1718
    %v1816 = vmul.f32 1.0, %v1815
    %v1817 = vrcp.pop %v1719
    %v1818 = vmul.f32 1.0, %v1817
    %v1819 = vrcp.pop %v1720
    %v1820 = vmul.f32 1.0, %v1819
    %v1821 = vrcp.pop %v1721
    %v1822 = vmul.f32 1.0, %v1821
    %v1823 = vrcp.pop %v1722
    %v1824 = vmul.f32 1.0, %v1823
    %v1825 = vrcp.pop %v1723
    %v1826 = vmul.f32 1.0, %v1825
    %v1827 = vrcp.pop %v1724
    %v1828 = vmul.f32 1.0, %v1827
    %v1829 = vrcp.pop %v1725
    %v1830 = vmul.f32 1.0, %v1829
    %v1831 = vrcp.pop %v1726
    %v1832 = vmul.f32 1.0, %v1831
    %v1833 = vrcp.pop %v1727
    %v1834 = vmul.f32 1.0, %v1833
    %v1835 = vrcp.pop %v1728
    %v1836 = vmul.f32 1.0, %v1835
    %v1837 = vrcp.pop %v1729
    %v1838 = vmul.f32 1.0, %v1837
    %v1839 = vrcp.pop %v1730
    %v1840 = vmul.f32 1.0, %v1839
    %v1841 = vrcp.pop %v1731
    %v1842 = vmul.f32 1.0, %v1841
    %v1843 = vrcp.pop %v1732
    %v1844 = vmul.f32 1.0, %v1843
    %v1845 = vrcp.pop %v1733
    %v1846 = vmul.f32 1.0, %v1845
    %v1847 = vrcp.pop %v1734
    %v1848 = vmul.f32 1.0, %v1847
    %v1849 = vrcp.pop %v1735
    %v1850 = vmul.f32 1.0, %v1849
    %v1851 = vrcp.pop %v1736
    %v1852 = vmul.f32 1.0, %v1851
    %v1853 = vrcp.pop %v1737
    %v1854 = vmul.f32 1.0, %v1853
    %v1855 = vrcp.pop %v1738
    %v1856 = vmul.f32 1.0, %v1855
    %v1857 = vrcp.pop %v1739
    %v1858 = vmul.f32 1.0, %v1857
    %v1859 = vrcp.pop %v1740
    %v1860 = vmul.f32 1.0, %v1859
    %v1861 = vrcp.pop %v1741
    %v1862 = vmul.f32 1.0, %v1861
    %v1863 = vrcp.pop %v1742
    %v1864 = vmul.f32 1.0, %v1863
    %v1865 = vrcp.pop %v1743
    %v1866 = vmul.f32 1.0, %v1865
    %v1867 = vrcp.pop %v1744
    %v1868 = vmul.f32 1.0, %v1867
    %v1869 = vrcp.pop %v1745
    %v1870 = vmul.f32 1.0, %v1869
    %v1871 = vrcp.pop %v1746
    %v1872 = vmul.f32 1.0, %v1871
    %v1873 = vrcp.pop %v1747
    %v1874 = vmul.f32 1.0, %v1873
    %v1875 = vrcp.pop %v1748
    %v1876 = vmul.f32 1.0, %v1875
    %v1877 = vld [vmem:[%s4] sm:$0x1]
    %v1879 = vlaneseq
    %v1880 = vshrl.u32 %v1879, 7
    %v1881 = vsub.s32 0, %v1880
    %v1882 = vrot.slane %v1877, %v1881
    %1884 = vmatprep.subr.mxu0 0.0
    %1885 = vmatpush1.msra.mxu0 %v1780
    %1886 = vmatprep.subr.mxu0 0.0
    %1887 = vmatpush1.msra.mxu0 %v1778
    %1888 = vmatprep.subr.mxu0 0.0
    %1889 = vmatpush1.msra.mxu0 %v1776
    %1890 = vmatprep.subr.mxu0 0.0
    %1891 = vmatpush1.msra.mxu0 %v1774
    %1892 = vmatprep.subr.mxu0 0.0
    %1893 = vmatpush1.msra.mxu0 %v1772
    %1894 = vmatprep.subr.mxu0 0.0
    %1895 = vmatpush1.msra.mxu0 %v1770
    %1896 = vmatprep.subr.mxu0 0.0
    %1897 = vmatpush1.msra.mxu0 %v1768
    %1898 = vmatprep.subr.mxu0 0.0
    %1899 = vmatpush1.msra.mxu0 %v1766
    %1900 = vmatprep.subr.mxu0 0.0
    %1901 = vmatpush1.msra.mxu0 %v1764
    %1902 = vmatprep.subr.mxu0 0.0
    %1903 = vmatpush1.msra.mxu0 %v1762
    %1904 = vmatprep.subr.mxu0 0.0
    %1905 = vmatpush1.msra.mxu0 %v1760
    %1906 = vmatprep.subr.mxu0 0.0
    %1907 = vmatpush1.msra.mxu0 %v1758
    %1908 = vmatprep.subr.mxu0 0.0
    %1909 = vmatpush1.msra.mxu0 %v1756
    %1910 = vmatprep.subr.mxu0 0.0
    %1911 = vmatpush1.msra.mxu0 %v1754
    %1912 = vmatprep.subr.mxu0 0.0
    %1913 = vmatpush1.msra.mxu0 %v1752
    %1914 = vmatprep.subr.mxu0 0.0
    %1915 = vmatpush1.msra.mxu0 %v1750
    %1916 = vmatprep.subr.mxu0 0.0
    %1917 = vmatpush2.msra.mxu0 %v1812
    %1918 = vmatprep.subr.mxu0 0.0
    %1919 = vmatpush2.msra.mxu0 %v1810
    %1920 = vmatprep.subr.mxu0 0.0
    %1921 = vmatpush2.msra.mxu0 %v1808
    %1922 = vmatprep.subr.mxu0 0.0
    %1923 = vmatpush2.msra.mxu0 %v1806
    %1924 = vmatprep.subr.mxu0 0.0
    %1925 = vmatpush2.msra.mxu0 %v1804
    %1926 = vmatprep.subr.mxu0 0.0
    %1927 = vmatpush2.msra.mxu0 %v1802
    %1928 = vmatprep.subr.mxu0 0.0
    %1929 = vmatpush2.msra.mxu0 %v1800
    %1930 = vmatprep.subr.mxu0 0.0
    %1931 = vmatpush2.msra.mxu0 %v1798
    %1932 = vmatprep.subr.mxu0 0.0
    %1933 = vmatpush2.msra.mxu0 %v1796
    %1934 = vmatprep.subr.mxu0 0.0
    %1935 = vmatpush2.msra.mxu0 %v1794
    %1936 = vmatprep.subr.mxu0 0.0
    %1937 = vmatpush2.msra.mxu0 %v1792
    %1938 = vmatprep.subr.mxu0 0.0
    %1939 = vmatpush2.msra.mxu0 %v1790
    %1940 = vmatprep.subr.mxu0 0.0
    %1941 = vmatpush2.msra.mxu0 %v1788
    %1942 = vmatprep.subr.mxu0 0.0
    %1943 = vmatpush2.msra.mxu0 %v1786
    %1944 = vmatprep.subr.mxu0 0.0
    %1945 = vmatpush2.msra.mxu0 %v1784
    %1946 = vmatprep.subr.mxu0 0.0
    %1947 = vmatpush2.msra.mxu0 %v1782
    %1948 = vmatprep.mubr.f32.mxu0 %v50
    %1949 = vmatmul.mubr.f32.gmra.mxu0 %v49
    %v1950 = vpop.f32.mrf.mxu0
    %v1951 = vadd.f32 %v1882, %v1950
    %v1952 = vpop.f32.mrf.mxu0
    %1953 = vmatprep.mubr.f32.mxu0 %v54
    %1954 = vmatmul.mubr.f32.gmra.mxu0 %v53
    %v1955 = vpop.f32.mrf.mxu0
    %v1956 = vadd.f32 %v1882, %v1955
    %v1957 = vpop.f32.mrf.mxu0
    %1958 = vmatprep.mubr.f32.mxu0 %v58
    %1959 = vmatmul.mubr.f32.gmra.mxu0 %v57
    %v1960 = vpop.f32.mrf.mxu0
    %v1961 = vadd.f32 %v1882, %v1960
    %v1962 = vpop.f32.mrf.mxu0
    %1963 = vmatprep.mubr.f32.mxu0 %v62
    %1964 = vmatmul.mubr.f32.gmra.mxu0 %v61
    %v1965 = vpop.f32.mrf.mxu0
    %v1966 = vadd.f32 %v1882, %v1965
    %v1967 = vpop.f32.mrf.mxu0
    %1968 = vmatprep.mubr.f32.mxu0 %v66
    %1969 = vmatmul.mubr.f32.gmra.mxu0 %v65
    %v1970 = vpop.f32.mrf.mxu0
    %v1971 = vadd.f32 %v1882, %v1970
    %v1972 = vpop.f32.mrf.mxu0
    %1973 = vmatprep.mubr.f32.mxu0 %v70
    %1974 = vmatmul.mubr.f32.gmra.mxu0 %v69
    %v1975 = vpop.f32.mrf.mxu0
    %v1976 = vadd.f32 %v1882, %v1975
    %v1977 = vpop.f32.mrf.mxu0
    %1978 = vmatprep.mubr.f32.mxu0 %v74
    %1979 = vmatmul.mubr.f32.gmra.mxu0 %v73
    %v1980 = vpop.f32.mrf.mxu0
    %v1981 = vadd.f32 %v1882, %v1980
    %v1982 = vpop.f32.mrf.mxu0
    %1983 = vmatprep.mubr.f32.mxu0 %v78
    %1984 = vmatmul.mubr.f32.gmra.mxu0 %v77
    %v1985 = vpop.f32.mrf.mxu0
    %v1986 = vadd.f32 %v1882, %v1985
    %v1987 = vpop.f32.mrf.mxu0
    %1988 = vmatprep.mubr.f32.mxu0 %v82
    %1989 = vmatmul.mubr.f32.gmra.mxu0 %v81
    %v1990 = vpop.f32.mrf.mxu0
    %v1991 = vadd.f32 %v1882, %v1990
    %v1992 = vpop.f32.mrf.mxu0
    %1993 = vmatprep.mubr.f32.mxu0 %v86
    %1994 = vmatmul.mubr.f32.gmra.mxu0 %v85
    %v1995 = vpop.f32.mrf.mxu0
    %v1996 = vadd.f32 %v1882, %v1995
    %v1997 = vpop.f32.mrf.mxu0
    %1998 = vmatprep.mubr.f32.mxu0 %v90
    %1999 = vmatmul.mubr.f32.gmra.mxu0 %v89
    %v2000 = vpop.f32.mrf.mxu0
    %v2001 = vadd.f32 %v1882, %v2000
    %v2002 = vpop.f32.mrf.mxu0
    %2003 = vmatprep.mubr.f32.mxu0 %v94
    %2004 = vmatmul.mubr.f32.gmra.mxu0 %v93
    %v2005 = vpop.f32.mrf.mxu0
    %v2006 = vadd.f32 %v1882, %v2005
    %v2007 = vpop.f32.mrf.mxu0
    %2008 = vmatprep.mubr.f32.mxu0 %v98
    %2009 = vmatmul.mubr.f32.gmra.mxu0 %v97
    %v2010 = vpop.f32.mrf.mxu0
    %v2011 = vadd.f32 %v1882, %v2010
    %v2012 = vpop.f32.mrf.mxu0
    %2013 = vmatprep.mubr.f32.mxu0 %v102
    %2014 = vmatmul.mubr.f32.gmra.mxu0 %v101
    %v2015 = vpop.f32.mrf.mxu0
    %v2016 = vadd.f32 %v1882, %v2015
    %v2017 = vpop.f32.mrf.mxu0
    %2018 = vmatprep.mubr.f32.mxu0 %v106
    %2019 = vmatmul.mubr.f32.gmra.mxu0 %v105
    %v2020 = vpop.f32.mrf.mxu0
    %v2021 = vadd.f32 %v1882, %v2020
    %v2022 = vpop.f32.mrf.mxu0
    %2023 = vmatprep.mubr.f32.mxu0 %v110
    %2024 = vmatmul.mubr.f32.gmra.mxu0 %v109
    %v2025 = vpop.f32.mrf.mxu0
    %v2026 = vadd.f32 %v1882, %v2025
    %v2027 = vpop.f32.mrf.mxu0
    %2028 = vmatprep.mubr.f32.mxu0 %v114
    %2029 = vmatmul.mubr.f32.gmra.mxu0 %v113
    %v2030 = vpop.f32.mrf.mxu0
    %v2031 = vadd.f32 %v1882, %v2030
    %v2032 = vpop.f32.mrf.mxu0
    %2033 = vmatprep.mubr.f32.mxu0 %v118
    %2034 = vmatmul.mubr.f32.gmra.mxu0 %v117
    %v2035 = vpop.f32.mrf.mxu0
    %v2036 = vadd.f32 %v1882, %v2035
    %v2037 = vpop.f32.mrf.mxu0
    %2038 = vmatprep.mubr.f32.mxu0 %v122
    %2039 = vmatmul.mubr.f32.gmra.mxu0 %v121
    %v2040 = vpop.f32.mrf.mxu0
    %v2041 = vadd.f32 %v1882, %v2040
    %v2042 = vpop.f32.mrf.mxu0
    %2043 = vmatprep.mubr.f32.mxu0 %v126
    %2044 = vmatmul.mubr.f32.gmra.mxu0 %v125
    %v2045 = vpop.f32.mrf.mxu0
    %v2046 = vadd.f32 %v1882, %v2045
    %v2047 = vpop.f32.mrf.mxu0
    %2048 = vmatprep.mubr.f32.mxu0 %v130
    %2049 = vmatmul.mubr.f32.gmra.mxu0 %v129
    %v2050 = vpop.f32.mrf.mxu0
    %v2051 = vadd.f32 %v1882, %v2050
    %v2052 = vpop.f32.mrf.mxu0
    %2053 = vmatprep.mubr.f32.mxu0 %v134
    %2054 = vmatmul.mubr.f32.gmra.mxu0 %v133
    %v2055 = vpop.f32.mrf.mxu0
    %v2056 = vadd.f32 %v1882, %v2055
    %v2057 = vpop.f32.mrf.mxu0
    %2058 = vmatprep.mubr.f32.mxu0 %v138
    %2059 = vmatmul.mubr.f32.gmra.mxu0 %v137
    %v2060 = vpop.f32.mrf.mxu0
    %v2061 = vadd.f32 %v1882, %v2060
    %v2062 = vpop.f32.mrf.mxu0
    %2063 = vmatprep.mubr.f32.mxu0 %v142
    %2064 = vmatmul.mubr.f32.gmra.mxu0 %v141
    %v2065 = vpop.f32.mrf.mxu0
    %v2066 = vadd.f32 %v1882, %v2065
    %v2067 = vpop.f32.mrf.mxu0
    %2068 = vmatprep.mubr.f32.mxu0 %v146
    %2069 = vmatmul.mubr.f32.gmra.mxu0 %v145
    %v2070 = vpop.f32.mrf.mxu0
    %v2071 = vadd.f32 %v1882, %v2070
    %v2072 = vpop.f32.mrf.mxu0
    %2073 = vmatprep.mubr.f32.mxu0 %v150
    %2074 = vmatmul.mubr.f32.gmra.mxu0 %v149
    %v2075 = vpop.f32.mrf.mxu0
    %v2076 = vadd.f32 %v1882, %v2075
    %v2077 = vpop.f32.mrf.mxu0
    %2078 = vmatprep.mubr.f32.mxu0 %v154
    %2079 = vmatmul.mubr.f32.gmra.mxu0 %v153
    %v2080 = vpop.f32.mrf.mxu0
    %v2081 = vadd.f32 %v1882, %v2080
    %v2082 = vpop.f32.mrf.mxu0
    %2083 = vmatprep.mubr.f32.mxu0 %v158
    %2084 = vmatmul.mubr.f32.gmra.mxu0 %v157
    %v2085 = vpop.f32.mrf.mxu0
    %v2086 = vadd.f32 %v1882, %v2085
    %v2087 = vpop.f32.mrf.mxu0
    %2088 = vmatprep.mubr.f32.mxu0 %v162
    %2089 = vmatmul.mubr.f32.gmra.mxu0 %v161
    %v2090 = vpop.f32.mrf.mxu0
    %v2091 = vadd.f32 %v1882, %v2090
    %v2092 = vpop.f32.mrf.mxu0
    %2093 = vmatprep.mubr.f32.mxu0 %v166
    %2094 = vmatmul.mubr.f32.gmra.mxu0 %v165
    %v2095 = vpop.f32.mrf.mxu0
    %v2096 = vadd.f32 %v1882, %v2095
    %v2097 = vpop.f32.mrf.mxu0
    %2098 = vmatprep.mubr.f32.mxu0 %v170
    %2099 = vmatmul.mubr.f32.gmra.mxu0 %v169
    %v2100 = vpop.f32.mrf.mxu0
    %v2101 = vadd.f32 %v1882, %v2100
    %v2102 = vpop.f32.mrf.mxu0
    %2103 = vmatprep.mubr.f32.mxu0 %v174
    %2104 = vmatmul.mubr.f32.gmra.mxu0 %v173
    %v2105 = vpop.f32.mrf.mxu0
    %v2106 = vadd.f32 %v1882, %v2105
    %v2107 = vpop.f32.mrf.mxu0
    %2108 = vmatprep.mubr.f32.mxu0 %v178
    %2109 = vmatmul.mubr.f32.gmra.mxu0 %v177
    %v2110 = vpop.f32.mrf.mxu0
    %v2111 = vadd.f32 %v1882, %v2110
    %v2112 = vpop.f32.mrf.mxu0
    %2113 = vmatprep.mubr.f32.mxu0 %v182
    %2114 = vmatmul.mubr.f32.gmra.mxu0 %v181
    %v2115 = vpop.f32.mrf.mxu0
    %v2116 = vadd.f32 %v1882, %v2115
    %v2117 = vpop.f32.mrf.mxu0
    %2118 = vmatprep.mubr.f32.mxu0 %v186
    %2119 = vmatmul.mubr.f32.gmra.mxu0 %v185
    %v2120 = vpop.f32.mrf.mxu0
    %v2121 = vadd.f32 %v1882, %v2120
    %v2122 = vpop.f32.mrf.mxu0
    %2123 = vmatprep.mubr.f32.mxu0 %v190
    %2124 = vmatmul.mubr.f32.gmra.mxu0 %v189
    %v2125 = vpop.f32.mrf.mxu0
    %v2126 = vadd.f32 %v1882, %v2125
    %v2127 = vpop.f32.mrf.mxu0
    %2128 = vmatprep.mubr.f32.mxu0 %v194
    %2129 = vmatmul.mubr.f32.gmra.mxu0 %v193
    %v2130 = vpop.f32.mrf.mxu0
    %v2131 = vadd.f32 %v1882, %v2130
    %v2132 = vpop.f32.mrf.mxu0
    %2133 = vmatprep.mubr.f32.mxu0 %v198
    %2134 = vmatmul.mubr.f32.gmra.mxu0 %v197
    %v2135 = vpop.f32.mrf.mxu0
    %v2136 = vadd.f32 %v1882, %v2135
    %v2137 = vpop.f32.mrf.mxu0
    %2138 = vmatprep.mubr.f32.mxu0 %v202
    %2139 = vmatmul.mubr.f32.gmra.mxu0 %v201
    %v2140 = vpop.f32.mrf.mxu0
    %v2141 = vadd.f32 %v1882, %v2140
    %v2142 = vpop.f32.mrf.mxu0
    %2143 = vmatprep.mubr.f32.mxu0 %v206
    %2144 = vmatmul.mubr.f32.gmra.mxu0 %v205
    %v2145 = vpop.f32.mrf.mxu0
    %v2146 = vadd.f32 %v1882, %v2145
    %v2147 = vpop.f32.mrf.mxu0
    %2148 = vmatprep.mubr.f32.mxu0 %v210
    %2149 = vmatmul.mubr.f32.gmra.mxu0 %v209
    %v2150 = vpop.f32.mrf.mxu0
    %v2151 = vadd.f32 %v1882, %v2150
    %v2152 = vpop.f32.mrf.mxu0
    %2153 = vmatprep.mubr.f32.mxu0 %v214
    %2154 = vmatmul.mubr.f32.gmra.mxu0 %v213
    %v2155 = vpop.f32.mrf.mxu0
    %v2156 = vadd.f32 %v1882, %v2155
    %v2157 = vpop.f32.mrf.mxu0
    %2158 = vmatprep.mubr.f32.mxu0 %v218
    %2159 = vmatmul.mubr.f32.gmra.mxu0 %v217
    %v2160 = vpop.f32.mrf.mxu0
    %v2161 = vadd.f32 %v1882, %v2160
    %v2162 = vpop.f32.mrf.mxu0
    %2163 = vmatprep.mubr.f32.mxu0 %v222
    %2164 = vmatmul.mubr.f32.gmra.mxu0 %v221
    %v2165 = vpop.f32.mrf.mxu0
    %v2166 = vadd.f32 %v1882, %v2165
    %v2167 = vpop.f32.mrf.mxu0
    %2168 = vmatprep.mubr.f32.mxu0 %v226
    %2169 = vmatmul.mubr.f32.gmra.mxu0 %v225
    %v2170 = vpop.f32.mrf.mxu0
    %v2171 = vadd.f32 %v1882, %v2170
    %v2172 = vpop.f32.mrf.mxu0
    %2173 = vmatprep.mubr.f32.mxu0 %v230
    %2174 = vmatmul.mubr.f32.gmra.mxu0 %v229
    %v2175 = vpop.f32.mrf.mxu0
    %v2176 = vadd.f32 %v1882, %v2175
    %v2177 = vpop.f32.mrf.mxu0
    %2178 = vmatprep.mubr.f32.mxu0 %v234
    %2179 = vmatmul.mubr.f32.gmra.mxu0 %v233
    %v2180 = vpop.f32.mrf.mxu0
    %v2181 = vadd.f32 %v1882, %v2180
    %v2182 = vpop.f32.mrf.mxu0
    %2183 = vmatprep.mubr.f32.mxu0 %v238
    %2184 = vmatmul.mubr.f32.gmra.mxu0 %v237
    %v2185 = vpop.f32.mrf.mxu0
    %v2186 = vadd.f32 %v1882, %v2185
    %v2187 = vpop.f32.mrf.mxu0
    %2188 = vmatprep.mubr.f32.mxu0 %v242
    %2189 = vmatmul.mubr.f32.gmra.mxu0 %v241
    %v2190 = vpop.f32.mrf.mxu0
    %v2191 = vadd.f32 %v1882, %v2190
    %v2192 = vpop.f32.mrf.mxu0
    %2193 = vmatprep.mubr.f32.mxu0 %v246
    %2194 = vmatmul.mubr.f32.gmra.mxu0 %v245
    %v2195 = vpop.f32.mrf.mxu0
    %v2196 = vadd.f32 %v1882, %v2195
    %v2197 = vpop.f32.mrf.mxu0
    %2198 = vmatprep.mubr.f32.mxu0 %v250
    %2199 = vmatmul.mubr.f32.gmra.mxu0 %v249
    %v2200 = vpop.f32.mrf.mxu0
    %v2201 = vadd.f32 %v1882, %v2200
    %v2202 = vpop.f32.mrf.mxu0
    %2203 = vmatprep.mubr.f32.mxu0 %v254
    %2204 = vmatmul.mubr.f32.gmra.mxu0 %v253
    %v2205 = vpop.f32.mrf.mxu0
    %v2206 = vadd.f32 %v1882, %v2205
    %v2207 = vpop.f32.mrf.mxu0
    %2208 = vmatprep.mubr.f32.mxu0 %v258
    %2209 = vmatmul.mubr.f32.gmra.mxu0 %v257
    %v2210 = vpop.f32.mrf.mxu0
    %v2211 = vadd.f32 %v1882, %v2210
    %v2212 = vpop.f32.mrf.mxu0
    %2213 = vmatprep.mubr.f32.mxu0 %v262
    %2214 = vmatmul.mubr.f32.gmra.mxu0 %v261
    %v2215 = vpop.f32.mrf.mxu0
    %v2216 = vadd.f32 %v1882, %v2215
    %v2217 = vpop.f32.mrf.mxu0
    %2218 = vmatprep.mubr.f32.mxu0 %v266
    %2219 = vmatmul.mubr.f32.gmra.mxu0 %v265
    %v2220 = vpop.f32.mrf.mxu0
    %v2221 = vadd.f32 %v1882, %v2220
    %v2222 = vpop.f32.mrf.mxu0
    %2223 = vmatprep.mubr.f32.mxu0 %v270
    %2224 = vmatmul.mubr.f32.gmra.mxu0 %v269
    %v2225 = vpop.f32.mrf.mxu0
    %v2226 = vadd.f32 %v1882, %v2225
    %v2227 = vpop.f32.mrf.mxu0
    %2228 = vmatprep.mubr.f32.mxu0 %v274
    %2229 = vmatmul.mubr.f32.gmra.mxu0 %v273
    %v2230 = vpop.f32.mrf.mxu0
    %v2231 = vadd.f32 %v1882, %v2230
    %v2232 = vpop.f32.mrf.mxu0
    %2233 = vmatprep.mubr.f32.mxu0 %v278
    %2234 = vmatmul.mubr.f32.gmra.mxu0 %v277
    %v2235 = vpop.f32.mrf.mxu0
    %v2236 = vadd.f32 %v1882, %v2235
    %v2237 = vpop.f32.mrf.mxu0
    %2238 = vmatprep.mubr.f32.mxu0 %v282
    %2239 = vmatmul.mubr.f32.gmra.mxu0 %v281
    %v2240 = vpop.f32.mrf.mxu0
    %v2241 = vadd.f32 %v1882, %v2240
    %v2242 = vpop.f32.mrf.mxu0
    %2243 = vmatprep.mubr.f32.mxu0 %v286
    %2244 = vmatmul.mubr.f32.gmra.mxu0 %v285
    %v2245 = vpop.f32.mrf.mxu0
    %v2246 = vadd.f32 %v1882, %v2245
    %v2247 = vpop.f32.mrf.mxu0
    %2248 = vmatprep.mubr.f32.mxu0 %v290
    %2249 = vmatmul.mubr.f32.gmra.mxu0 %v289
    %v2250 = vpop.f32.mrf.mxu0
    %v2251 = vadd.f32 %v1882, %v2250
    %v2252 = vpop.f32.mrf.mxu0
    %2253 = vmatprep.mubr.f32.mxu0 %v294
    %2254 = vmatmul.mubr.f32.gmra.mxu0 %v293
    %v2255 = vpop.f32.mrf.mxu0
    %v2256 = vadd.f32 %v1882, %v2255
    %v2257 = vpop.f32.mrf.mxu0
    %2258 = vmatprep.mubr.f32.mxu0 %v298
    %2259 = vmatmul.mubr.f32.gmra.mxu0 %v297
    %v2260 = vpop.f32.mrf.mxu0
    %v2261 = vadd.f32 %v1882, %v2260
    %v2262 = vpop.f32.mrf.mxu0
    %2263 = vmatprep.mubr.f32.mxu0 %v302
    %2264 = vmatmul.mubr.f32.gmra.mxu0 %v301
    %v2265 = vpop.f32.mrf.mxu0
    %v2266 = vadd.f32 %v1882, %v2265
    %v2267 = vpop.f32.mrf.mxu0
    %2268 = vdwg.mxu0
    %2269 = vmatprep.subr.mxu0 0.0
    %2270 = vmatpush1.msra.mxu0 %v1844
    %2271 = vmatprep.subr.mxu0 0.0
    %2272 = vmatpush1.msra.mxu0 %v1842
    %2273 = vmatprep.subr.mxu0 0.0
    %2274 = vmatpush1.msra.mxu0 %v1840
    %2275 = vmatprep.subr.mxu0 0.0
    %2276 = vmatpush1.msra.mxu0 %v1838
    %2277 = vmatprep.subr.mxu0 0.0
    %2278 = vmatpush1.msra.mxu0 %v1836
    %2279 = vmatprep.subr.mxu0 0.0
    %2280 = vmatpush1.msra.mxu0 %v1834
    %2281 = vmatprep.subr.mxu0 0.0
    %2282 = vmatpush1.msra.mxu0 %v1832
    %2283 = vmatprep.subr.mxu0 0.0
    %2284 = vmatpush1.msra.mxu0 %v1830
    %2285 = vmatprep.subr.mxu0 0.0
    %2286 = vmatpush1.msra.mxu0 %v1828
    %2287 = vmatprep.subr.mxu0 0.0
    %2288 = vmatpush1.msra.mxu0 %v1826
    %2289 = vmatprep.subr.mxu0 0.0
    %2290 = vmatpush1.msra.mxu0 %v1824
    %2291 = vmatprep.subr.mxu0 0.0
    %2292 = vmatpush1.msra.mxu0 %v1822
    %2293 = vmatprep.subr.mxu0 0.0
    %2294 = vmatpush1.msra.mxu0 %v1820
    %2295 = vmatprep.subr.mxu0 0.0
    %2296 = vmatpush1.msra.mxu0 %v1818
    %2297 = vmatprep.subr.mxu0 0.0
    %2298 = vmatpush1.msra.mxu0 %v1816
    %2299 = vmatprep.subr.mxu0 0.0
    %2300 = vmatpush1.msra.mxu0 %v1814
    %2301 = vmatprep.subr.mxu0 0.0
    %2302 = vmatpush2.msra.mxu0 %v1876
    %2303 = vmatprep.subr.mxu0 0.0
    %2304 = vmatpush2.msra.mxu0 %v1874
    %2305 = vmatprep.subr.mxu0 0.0
    %2306 = vmatpush2.msra.mxu0 %v1872
    %2307 = vmatprep.subr.mxu0 0.0
    %2308 = vmatpush2.msra.mxu0 %v1870
    %2309 = vmatprep.subr.mxu0 0.0
    %2310 = vmatpush2.msra.mxu0 %v1868
    %2311 = vmatprep.subr.mxu0 0.0
    %2312 = vmatpush2.msra.mxu0 %v1866
    %2313 = vmatprep.subr.mxu0 0.0
    %2314 = vmatpush2.msra.mxu0 %v1864
    %2315 = vmatprep.subr.mxu0 0.0
    %2316 = vmatpush2.msra.mxu0 %v1862
    %2317 = vmatprep.subr.mxu0 0.0
    %2318 = vmatpush2.msra.mxu0 %v1860
    %2319 = vmatprep.subr.mxu0 0.0
    %2320 = vmatpush2.msra.mxu0 %v1858
    %2321 = vmatprep.subr.mxu0 0.0
    %2322 = vmatpush2.msra.mxu0 %v1856
    %2323 = vmatprep.subr.mxu0 0.0
    %2324 = vmatpush2.msra.mxu0 %v1854
    %2325 = vmatprep.subr.mxu0 0.0
    %2326 = vmatpush2.msra.mxu0 %v1852
    %2327 = vmatprep.subr.mxu0 0.0
    %2328 = vmatpush2.msra.mxu0 %v1850
    %2329 = vmatprep.subr.mxu0 0.0
    %2330 = vmatpush2.msra.mxu0 %v1848
    %2331 = vmatprep.subr.mxu0 0.0
    %2332 = vmatpush2.msra.mxu0 %v1846
    %2333 = vmatprep.mubr.f32.mxu0 %v52
    %2334 = vmatmul.mubr.f32.gmra.mxu0 %v51
    %v2335 = vpop.f32.mrf.mxu0
    %v2336 = vadd.f32 %v1951, %v2335
    %v2337 = vpop.f32.mrf.mxu0
    %2338 = vmatprep.mubr.f32.mxu0 %v56
    %2339 = vmatmul.mubr.f32.gmra.mxu0 %v55
    %v2340 = vpop.f32.mrf.mxu0
    %v2341 = vadd.f32 %v1956, %v2340
    %v2342 = vpop.f32.mrf.mxu0
    %2343 = vmatprep.mubr.f32.mxu0 %v60
    %2344 = vmatmul.mubr.f32.gmra.mxu0 %v59
    %v2345 = vpop.f32.mrf.mxu0
    %v2346 = vadd.f32 %v1961, %v2345
    %v2347 = vpop.f32.mrf.mxu0
    %2348 = vmatprep.mubr.f32.mxu0 %v64
    %2349 = vmatmul.mubr.f32.gmra.mxu0 %v63
    %v2350 = vpop.f32.mrf.mxu0
    %v2351 = vadd.f32 %v1966, %v2350
    %v2352 = vpop.f32.mrf.mxu0
    %2353 = vmatprep.mubr.f32.mxu0 %v68
    %2354 = vmatmul.mubr.f32.gmra.mxu0 %v67
    %v2355 = vpop.f32.mrf.mxu0
    %v2356 = vadd.f32 %v1971, %v2355
    %v2357 = vpop.f32.mrf.mxu0
    %2358 = vmatprep.mubr.f32.mxu0 %v72
    %2359 = vmatmul.mubr.f32.gmra.mxu0 %v71
    %v2360 = vpop.f32.mrf.mxu0
    %v2361 = vadd.f32 %v1976, %v2360
    %v2362 = vpop.f32.mrf.mxu0
    %2363 = vmatprep.mubr.f32.mxu0 %v76
    %2364 = vmatmul.mubr.f32.gmra.mxu0 %v75
    %v2365 = vpop.f32.mrf.mxu0
    %v2366 = vadd.f32 %v1981, %v2365
    %v2367 = vpop.f32.mrf.mxu0
    %2368 = vmatprep.mubr.f32.mxu0 %v80
    %2369 = vmatmul.mubr.f32.gmra.mxu0 %v79
    %v2370 = vpop.f32.mrf.mxu0
    %v2371 = vadd.f32 %v1986, %v2370
    %v2372 = vpop.f32.mrf.mxu0
    %2373 = vmatprep.mubr.f32.mxu0 %v84
    %2374 = vmatmul.mubr.f32.gmra.mxu0 %v83
    %v2375 = vpop.f32.mrf.mxu0
    %v2376 = vadd.f32 %v1991, %v2375
    %v2377 = vpop.f32.mrf.mxu0
    %2378 = vmatprep.mubr.f32.mxu0 %v88
    %2379 = vmatmul.mubr.f32.gmra.mxu0 %v87
    %v2380 = vpop.f32.mrf.mxu0
    %v2381 = vadd.f32 %v1996, %v2380
    %v2382 = vpop.f32.mrf.mxu0
    %2383 = vmatprep.mubr.f32.mxu0 %v92
    %2384 = vmatmul.mubr.f32.gmra.mxu0 %v91
    %v2385 = vpop.f32.mrf.mxu0
    %v2386 = vadd.f32 %v2001, %v2385
    %v2387 = vpop.f32.mrf.mxu0
    %2388 = vmatprep.mubr.f32.mxu0 %v96
    %2389 = vmatmul.mubr.f32.gmra.mxu0 %v95
    %v2390 = vpop.f32.mrf.mxu0
    %v2391 = vadd.f32 %v2006, %v2390
    %v2392 = vpop.f32.mrf.mxu0
    %2393 = vmatprep.mubr.f32.mxu0 %v100
    %2394 = vmatmul.mubr.f32.gmra.mxu0 %v99
    %v2395 = vpop.f32.mrf.mxu0
    %v2396 = vadd.f32 %v2011, %v2395
    %v2397 = vpop.f32.mrf.mxu0
    %2398 = vmatprep.mubr.f32.mxu0 %v104
    %2399 = vmatmul.mubr.f32.gmra.mxu0 %v103
    %v2400 = vpop.f32.mrf.mxu0
    %v2401 = vadd.f32 %v2016, %v2400
    %v2402 = vpop.f32.mrf.mxu0
    %2403 = vmatprep.mubr.f32.mxu0 %v108
    %2404 = vmatmul.mubr.f32.gmra.mxu0 %v107
    %v2405 = vpop.f32.mrf.mxu0
    %v2406 = vadd.f32 %v2021, %v2405
    %v2407 = vpop.f32.mrf.mxu0
    %2408 = vmatprep.mubr.f32.mxu0 %v112
    %2409 = vmatmul.mubr.f32.gmra.mxu0 %v111
    %v2410 = vpop.f32.mrf.mxu0
    %v2411 = vadd.f32 %v2026, %v2410
    %v2412 = vpop.f32.mrf.mxu0
    %2413 = vmatprep.mubr.f32.mxu0 %v116
    %2414 = vmatmul.mubr.f32.gmra.mxu0 %v115
    %v2415 = vpop.f32.mrf.mxu0
    %v2416 = vadd.f32 %v2031, %v2415
    %v2417 = vpop.f32.mrf.mxu0
    %2418 = vmatprep.mubr.f32.mxu0 %v120
    %2419 = vmatmul.mubr.f32.gmra.mxu0 %v119
    %v2420 = vpop.f32.mrf.mxu0
    %v2421 = vadd.f32 %v2036, %v2420
    %v2422 = vpop.f32.mrf.mxu0
    %2423 = vmatprep.mubr.f32.mxu0 %v124
    %2424 = vmatmul.mubr.f32.gmra.mxu0 %v123
    %v2425 = vpop.f32.mrf.mxu0
    %v2426 = vadd.f32 %v2041, %v2425
    %v2427 = vpop.f32.mrf.mxu0
    %2428 = vmatprep.mubr.f32.mxu0 %v128
    %2429 = vmatmul.mubr.f32.gmra.mxu0 %v127
    %v2430 = vpop.f32.mrf.mxu0
    %v2431 = vadd.f32 %v2046, %v2430
    %v2432 = vpop.f32.mrf.mxu0
    %2433 = vmatprep.mubr.f32.mxu0 %v132
    %2434 = vmatmul.mubr.f32.gmra.mxu0 %v131
    %v2435 = vpop.f32.mrf.mxu0
    %v2436 = vadd.f32 %v2051, %v2435
    %v2437 = vpop.f32.mrf.mxu0
    %2438 = vmatprep.mubr.f32.mxu0 %v136
    %2439 = vmatmul.mubr.f32.gmra.mxu0 %v135
    %v2440 = vpop.f32.mrf.mxu0
    %v2441 = vadd.f32 %v2056, %v2440
    %v2442 = vpop.f32.mrf.mxu0
    %2443 = vmatprep.mubr.f32.mxu0 %v140
    %2444 = vmatmul.mubr.f32.gmra.mxu0 %v139
    %v2445 = vpop.f32.mrf.mxu0
    %v2446 = vadd.f32 %v2061, %v2445
    %v2447 = vpop.f32.mrf.mxu0
    %2448 = vmatprep.mubr.f32.mxu0 %v144
    %2449 = vmatmul.mubr.f32.gmra.mxu0 %v143
    %v2450 = vpop.f32.mrf.mxu0
    %v2451 = vadd.f32 %v2066, %v2450
    %v2452 = vpop.f32.mrf.mxu0
    %2453 = vmatprep.mubr.f32.mxu0 %v148
    %2454 = vmatmul.mubr.f32.gmra.mxu0 %v147
    %v2455 = vpop.f32.mrf.mxu0
    %v2456 = vadd.f32 %v2071, %v2455
    %v2457 = vpop.f32.mrf.mxu0
    %2458 = vmatprep.mubr.f32.mxu0 %v152
    %2459 = vmatmul.mubr.f32.gmra.mxu0 %v151
    %v2460 = vpop.f32.mrf.mxu0
    %v2461 = vadd.f32 %v2076, %v2460
    %v2462 = vpop.f32.mrf.mxu0
    %2463 = vmatprep.mubr.f32.mxu0 %v156
    %2464 = vmatmul.mubr.f32.gmra.mxu0 %v155
    %v2465 = vpop.f32.mrf.mxu0
    %v2466 = vadd.f32 %v2081, %v2465
    %v2467 = vpop.f32.mrf.mxu0
    %2468 = vmatprep.mubr.f32.mxu0 %v160
    %2469 = vmatmul.mubr.f32.gmra.mxu0 %v159
    %v2470 = vpop.f32.mrf.mxu0
    %v2471 = vadd.f32 %v2086, %v2470
    %v2472 = vpop.f32.mrf.mxu0
    %2473 = vmatprep.mubr.f32.mxu0 %v164
    %2474 = vmatmul.mubr.f32.gmra.mxu0 %v163
    %v2475 = vpop.f32.mrf.mxu0
    %v2476 = vadd.f32 %v2091, %v2475
    %v2477 = vpop.f32.mrf.mxu0
    %2478 = vmatprep.mubr.f32.mxu0 %v168
    %2479 = vmatmul.mubr.f32.gmra.mxu0 %v167
    %v2480 = vpop.f32.mrf.mxu0
    %v2481 = vadd.f32 %v2096, %v2480
    %v2482 = vpop.f32.mrf.mxu0
    %2483 = vmatprep.mubr.f32.mxu0 %v172
    %2484 = vmatmul.mubr.f32.gmra.mxu0 %v171
    %v2485 = vpop.f32.mrf.mxu0
    %v2486 = vadd.f32 %v2101, %v2485
    %v2487 = vpop.f32.mrf.mxu0
    %2488 = vmatprep.mubr.f32.mxu0 %v176
    %2489 = vmatmul.mubr.f32.gmra.mxu0 %v175
    %v2490 = vpop.f32.mrf.mxu0
    %v2491 = vadd.f32 %v2106, %v2490
    %v2492 = vpop.f32.mrf.mxu0
    %2493 = vmatprep.mubr.f32.mxu0 %v180
    %2494 = vmatmul.mubr.f32.gmra.mxu0 %v179
    %v2495 = vpop.f32.mrf.mxu0
    %v2496 = vadd.f32 %v2111, %v2495
    %v2497 = vpop.f32.mrf.mxu0
    %2498 = vmatprep.mubr.f32.mxu0 %v184
    %2499 = vmatmul.mubr.f32.gmra.mxu0 %v183
    %v2500 = vpop.f32.mrf.mxu0
    %v2501 = vadd.f32 %v2116, %v2500
    %v2502 = vpop.f32.mrf.mxu0
    %2503 = vmatprep.mubr.f32.mxu0 %v188
    %2504 = vmatmul.mubr.f32.gmra.mxu0 %v187
    %v2505 = vpop.f32.mrf.mxu0
    %v2506 = vadd.f32 %v2121, %v2505
    %v2507 = vpop.f32.mrf.mxu0
    %2508 = vmatprep.mubr.f32.mxu0 %v192
    %2509 = vmatmul.mubr.f32.gmra.mxu0 %v191
    %v2510 = vpop.f32.mrf.mxu0
    %v2511 = vadd.f32 %v2126, %v2510
    %v2512 = vpop.f32.mrf.mxu0
    %2513 = vmatprep.mubr.f32.mxu0 %v196
    %2514 = vmatmul.mubr.f32.gmra.mxu0 %v195
    %v2515 = vpop.f32.mrf.mxu0
    %v2516 = vadd.f32 %v2131, %v2515
    %v2517 = vpop.f32.mrf.mxu0
    %2518 = vmatprep.mubr.f32.mxu0 %v200
    %2519 = vmatmul.mubr.f32.gmra.mxu0 %v199
    %v2520 = vpop.f32.mrf.mxu0
    %v2521 = vadd.f32 %v2136, %v2520
    %v2522 = vpop.f32.mrf.mxu0
    %2523 = vmatprep.mubr.f32.mxu0 %v204
    %2524 = vmatmul.mubr.f32.gmra.mxu0 %v203
    %v2525 = vpop.f32.mrf.mxu0
    %v2526 = vadd.f32 %v2141, %v2525
    %v2527 = vpop.f32.mrf.mxu0
    %2528 = vmatprep.mubr.f32.mxu0 %v208
    %2529 = vmatmul.mubr.f32.gmra.mxu0 %v207
    %v2530 = vpop.f32.mrf.mxu0
    %v2531 = vadd.f32 %v2146, %v2530
    %v2532 = vpop.f32.mrf.mxu0
    %2533 = vmatprep.mubr.f32.mxu0 %v212
    %2534 = vmatmul.mubr.f32.gmra.mxu0 %v211
    %v2535 = vpop.f32.mrf.mxu0
    %v2536 = vadd.f32 %v2151, %v2535
    %v2537 = vpop.f32.mrf.mxu0
    %2538 = vmatprep.mubr.f32.mxu0 %v216
    %2539 = vmatmul.mubr.f32.gmra.mxu0 %v215
    %v2540 = vpop.f32.mrf.mxu0
    %v2541 = vadd.f32 %v2156, %v2540
    %v2542 = vpop.f32.mrf.mxu0
    %2543 = vmatprep.mubr.f32.mxu0 %v220
    %2544 = vmatmul.mubr.f32.gmra.mxu0 %v219
    %v2545 = vpop.f32.mrf.mxu0
    %v2546 = vadd.f32 %v2161, %v2545
    %v2547 = vpop.f32.mrf.mxu0
    %2548 = vmatprep.mubr.f32.mxu0 %v224
    %2549 = vmatmul.mubr.f32.gmra.mxu0 %v223
    %v2550 = vpop.f32.mrf.mxu0
    %v2551 = vadd.f32 %v2166, %v2550
    %v2552 = vpop.f32.mrf.mxu0
    %2553 = vmatprep.mubr.f32.mxu0 %v228
    %2554 = vmatmul.mubr.f32.gmra.mxu0 %v227
    %v2555 = vpop.f32.mrf.mxu0
    %v2556 = vadd.f32 %v2171, %v2555
    %v2557 = vpop.f32.mrf.mxu0
    %2558 = vmatprep.mubr.f32.mxu0 %v232
    %2559 = vmatmul.mubr.f32.gmra.mxu0 %v231
    %v2560 = vpop.f32.mrf.mxu0
    %v2561 = vadd.f32 %v2176, %v2560
    %v2562 = vpop.f32.mrf.mxu0
    %2563 = vmatprep.mubr.f32.mxu0 %v236
    %2564 = vmatmul.mubr.f32.gmra.mxu0 %v235
    %v2565 = vpop.f32.mrf.mxu0
    %v2566 = vadd.f32 %v2181, %v2565
    %v2567 = vpop.f32.mrf.mxu0
    %2568 = vmatprep.mubr.f32.mxu0 %v240
    %2569 = vmatmul.mubr.f32.gmra.mxu0 %v239
    %v2570 = vpop.f32.mrf.mxu0
    %v2571 = vadd.f32 %v2186, %v2570
    %v2572 = vpop.f32.mrf.mxu0
    %2573 = vmatprep.mubr.f32.mxu0 %v244
    %2574 = vmatmul.mubr.f32.gmra.mxu0 %v243
    %v2575 = vpop.f32.mrf.mxu0
    %v2576 = vadd.f32 %v2191, %v2575
    %v2577 = vpop.f32.mrf.mxu0
    %2578 = vmatprep.mubr.f32.mxu0 %v248
    %2579 = vmatmul.mubr.f32.gmra.mxu0 %v247
    %v2580 = vpop.f32.mrf.mxu0
    %v2581 = vadd.f32 %v2196, %v2580
    %v2582 = vpop.f32.mrf.mxu0
    %2583 = vmatprep.mubr.f32.mxu0 %v252
    %2584 = vmatmul.mubr.f32.gmra.mxu0 %v251
    %v2585 = vpop.f32.mrf.mxu0
    %v2586 = vadd.f32 %v2201, %v2585
    %v2587 = vpop.f32.mrf.mxu0
    %2588 = vmatprep.mubr.f32.mxu0 %v256
    %2589 = vmatmul.mubr.f32.gmra.mxu0 %v255
    %v2590 = vpop.f32.mrf.mxu0
    %v2591 = vadd.f32 %v2206, %v2590
    %v2592 = vpop.f32.mrf.mxu0
    %2593 = vmatprep.mubr.f32.mxu0 %v260
    %2594 = vmatmul.mubr.f32.gmra.mxu0 %v259
    %v2595 = vpop.f32.mrf.mxu0
    %v2596 = vadd.f32 %v2211, %v2595
    %v2597 = vpop.f32.mrf.mxu0
    %2598 = vmatprep.mubr.f32.mxu0 %v264
    %2599 = vmatmul.mubr.f32.gmra.mxu0 %v263
    %v2600 = vpop.f32.mrf.mxu0
    %v2601 = vadd.f32 %v2216, %v2600
    %v2602 = vpop.f32.mrf.mxu0
    %2603 = vmatprep.mubr.f32.mxu0 %v268
    %2604 = vmatmul.mubr.f32.gmra.mxu0 %v267
    %v2605 = vpop.f32.mrf.mxu0
    %v2606 = vadd.f32 %v2221, %v2605
    %v2607 = vpop.f32.mrf.mxu0
    %2608 = vmatprep.mubr.f32.mxu0 %v272
    %2609 = vmatmul.mubr.f32.gmra.mxu0 %v271
    %v2610 = vpop.f32.mrf.mxu0
    %v2611 = vadd.f32 %v2226, %v2610
    %v2612 = vpop.f32.mrf.mxu0
    %2613 = vmatprep.mubr.f32.mxu0 %v276
    %2614 = vmatmul.mubr.f32.gmra.mxu0 %v275
    %v2615 = vpop.f32.mrf.mxu0
    %v2616 = vadd.f32 %v2231, %v2615
    %v2617 = vpop.f32.mrf.mxu0
    %2618 = vmatprep.mubr.f32.mxu0 %v280
    %2619 = vmatmul.mubr.f32.gmra.mxu0 %v279
    %v2620 = vpop.f32.mrf.mxu0
    %v2621 = vadd.f32 %v2236, %v2620
    %v2622 = vpop.f32.mrf.mxu0
    %2623 = vmatprep.mubr.f32.mxu0 %v284
    %2624 = vmatmul.mubr.f32.gmra.mxu0 %v283
    %v2625 = vpop.f32.mrf.mxu0
    %v2626 = vadd.f32 %v2241, %v2625
    %v2627 = vpop.f32.mrf.mxu0
    %2628 = vmatprep.mubr.f32.mxu0 %v288
    %2629 = vmatmul.mubr.f32.gmra.mxu0 %v287
    %v2630 = vpop.f32.mrf.mxu0
    %v2631 = vadd.f32 %v2246, %v2630
    %v2632 = vpop.f32.mrf.mxu0
    %2633 = vmatprep.mubr.f32.mxu0 %v292
    %2634 = vmatmul.mubr.f32.gmra.mxu0 %v291
    %v2635 = vpop.f32.mrf.mxu0
    %v2636 = vadd.f32 %v2251, %v2635
    %v2637 = vpop.f32.mrf.mxu0
    %2638 = vmatprep.mubr.f32.mxu0 %v296
    %2639 = vmatmul.mubr.f32.gmra.mxu0 %v295
    %v2640 = vpop.f32.mrf.mxu0
    %v2641 = vadd.f32 %v2256, %v2640
    %v2642 = vpop.f32.mrf.mxu0
    %2643 = vmatprep.mubr.f32.mxu0 %v300
    %2644 = vmatmul.mubr.f32.gmra.mxu0 %v299
    %v2645 = vpop.f32.mrf.mxu0
    %v2646 = vadd.f32 %v2261, %v2645
    %v2647 = vpop.f32.mrf.mxu0
    %2648 = vmatprep.mubr.f32.mxu0 %v304
    %2649 = vmatmul.mubr.f32.gmra.mxu0 %v303
    %v2650 = vpop.f32.mrf.mxu0
    %v2651 = vadd.f32 %v2266, %v2650
    %v2652 = vpop.f32.mrf.mxu0
    %2653 = vdwg.mxu0
    %2654 = vst [vmem:[#allocation7] sm:$0xff] %v2336
    %2655 = vst [vmem:[#allocation7 + $0x8] sm:$0xff] %v2341
    %2656 = vst [vmem:[#allocation7 + $0x10] sm:$0xff] %v2346
    %2657 = vst [vmem:[#allocation7 + $0x18] sm:$0xff] %v2351
    %2658 = vst [vmem:[#allocation7 + $0x20] sm:$0xff] %v2356
    %2659 = vst [vmem:[#allocation7 + $0x28] sm:$0xff] %v2361
    %2660 = vst [vmem:[#allocation7 + $0x30] sm:$0xff] %v2366
    %2661 = vst [vmem:[#allocation7 + $0x38] sm:$0xff] %v2371
    %2662 = vst [vmem:[#allocation7 + $0x40] sm:$0xff] %v2376
    %2663 = vst [vmem:[#allocation7 + $0x48] sm:$0xff] %v2381
    %2664 = vst [vmem:[#allocation7 + $0x50] sm:$0xff] %v2386
    %2665 = vst [vmem:[#allocation7 + $0x58] sm:$0xff] %v2391
    %2666 = vst [vmem:[#allocation7 + $0x60] sm:$0xff] %v2396
    %2667 = vst [vmem:[#allocation7 + $0x68] sm:$0xff] %v2401
    %2668 = vst [vmem:[#allocation7 + $0x70] sm:$0xff] %v2406
    %2669 = vst [vmem:[#allocation7 + $0x78] sm:$0xff] %v2411
    %2670 = vst [vmem:[#allocation7 + $0x80] sm:$0xff] %v2416
    %2671 = vst [vmem:[#allocation7 + $0x88] sm:$0xff] %v2421
    %2672 = vst [vmem:[#allocation7 + $0x90] sm:$0xff] %v2426
    %2673 = vst [vmem:[#allocation7 + $0x98] sm:$0xff] %v2431
    %2674 = vst [vmem:[#allocation7 + $0xa0] sm:$0xff] %v2436
    %2675 = vst [vmem:[#allocation7 + $0xa8] sm:$0xff] %v2441
    %2676 = vst [vmem:[#allocation7 + $0xb0] sm:$0xff] %v2446
    %2677 = vst [vmem:[#allocation7 + $0xb8] sm:$0xff] %v2451
    %2678 = vst [vmem:[#allocation7 + $0xc0] sm:$0xff] %v2456
    %2679 = vst [vmem:[#allocation7 + $0xc8] sm:$0xff] %v2461
    %2680 = vst [vmem:[#allocation7 + $0xd0] sm:$0xff] %v2466
    %2681 = vst [vmem:[#allocation7 + $0xd8] sm:$0xff] %v2471
    %2682 = vst [vmem:[#allocation7 + $0xe0] sm:$0xff] %v2476
    %2683 = vst [vmem:[#allocation7 + $0xe8] sm:$0xff] %v2481
    %2684 = vst [vmem:[#allocation7 + $0xf0] sm:$0xff] %v2486
    %2685 = vst [vmem:[#allocation7 + $0xf8] sm:$0xff] %v2491
    %2686 = vst [vmem:[#allocation7 + $0x100] sm:$0xff] %v2496
    %2687 = vst [vmem:[#allocation7 + $0x108] sm:$0xff] %v2501
    %2688 = vst [vmem:[#allocation7 + $0x110] sm:$0xff] %v2506
    %2689 = vst [vmem:[#allocation7 + $0x118] sm:$0xff] %v2511
    %2690 = vst [vmem:[#allocation7 + $0x120] sm:$0xff] %v2516
    %2691 = vst [vmem:[#allocation7 + $0x128] sm:$0xff] %v2521
    %2692 = vst [vmem:[#allocation7 + $0x130] sm:$0xff] %v2526
    %2693 = vst [vmem:[#allocation7 + $0x138] sm:$0xff] %v2531
    %2694 = vst [vmem:[#allocation7 + $0x140] sm:$0xff] %v2536
    %2695 = vst [vmem:[#allocation7 + $0x148] sm:$0xff] %v2541
    %2696 = vst [vmem:[#allocation7 + $0x150] sm:$0xff] %v2546
    %2697 = vst [vmem:[#allocation7 + $0x158] sm:$0xff] %v2551
    %2698 = vst [vmem:[#allocation7 + $0x160] sm:$0xff] %v2556
    %2699 = vst [vmem:[#allocation7 + $0x168] sm:$0xff] %v2561
    %2700 = vst [vmem:[#allocation7 + $0x170] sm:$0xff] %v2566
    %2701 = vst [vmem:[#allocation7 + $0x178] sm:$0xff] %v2571
    %2702 = vst [vmem:[#allocation7 + $0x180] sm:$0xff] %v2576
    %2703 = vst [vmem:[#allocation7 + $0x188] sm:$0xff] %v2581
    %2704 = vst [vmem:[#allocation7 + $0x190] sm:$0xff] %v2586
    %2705 = vst [vmem:[#allocation7 + $0x198] sm:$0xff] %v2591
    %2706 = vst [vmem:[#allocation7 + $0x1a0] sm:$0xff] %v2596
    %2707 = vst [vmem:[#allocation7 + $0x1a8] sm:$0xff] %v2601
    %2708 = vst [vmem:[#allocation7 + $0x1b0] sm:$0xff] %v2606
    %2709 = vst [vmem:[#allocation7 + $0x1b8] sm:$0xff] %v2611
    %2710 = vst [vmem:[#allocation7 + $0x1c0] sm:$0xff] %v2616
    %2711 = vst [vmem:[#allocation7 + $0x1c8] sm:$0xff] %v2621
    %2712 = vst [vmem:[#allocation7 + $0x1d0] sm:$0xff] %v2626
    %2713 = vst [vmem:[#allocation7 + $0x1d8] sm:$0xff] %v2631
    %2714 = vst [vmem:[#allocation7 + $0x1e0] sm:$0xff] %v2636
    %2715 = vst [vmem:[#allocation7 + $0x1e8] sm:$0xff] %v2641
    %2716 = vst [vmem:[#allocation7 + $0x1f0] sm:$0xff] %v2646
    %2717 = vst [vmem:[#allocation7 + $0x1f8] sm:$0xff] %v2651
    // Predicated region
    $region30: #{tpu_custom_call.1} parent=1 // pred_check
      _
    $region31: #{tpu_custom_call.1} parent=1 // pred_check_branch
      %2719 = sbr.rel (0) target = $region33
    $region32: #{tpu_custom_call.1} parent=1 // pred_region
      %s2721 = ssub.s32 8192, 8192
      %2722 = vsyncadd [#allocation4], %s2721
      %s2723 = sshll.u32 [#allocation7], 4
      %s2724 = int_to_ptr.vmem [resolvable:$true] %s2723
      %2729 = dma.vmem_to_hbm [thread:$0]  %s2724, 8192, %s5, [#allocation4], 128, 128, 8
    $region33: #{tpu_custom_call.1} parent=1 // pred_fallthru
      _
    // Predicated region
    $region34: #{tpu_custom_call.1} parent=1 // pred_check
      _
    $region35: #{tpu_custom_call.1} parent=1 // pred_check_branch
      %2731 = sbr.rel (0) target = $region37
    $region36: #{tpu_custom_call.1} parent=1 // pred_region
      %2732 = dma.done [#allocation4], 8192
    $region37: #{tpu_custom_call.1} parent=1 // pred_fallthru
      _
    %2733 = vsyncpa [#allocation3], 1
    %2734 = vsyncpa [#allocation6], 1
    %2735 = vsyncpa [#allocation4], 1

</llo_original>
